<compile_context>
chip_gen: v5e
topology: v5e:2x2
jax: 0.10.0
libtpu: 0.0.40
codegen_flags: <defaults>
</compile_context>

<pallas_src>
import jax
import jax.numpy as jnp
from jax.experimental import pallas as pl
from jax.experimental.pallas import tpu as pltpu

# ----------------------- small synthetic RoBERTa config ----------------------
B = 2            # batch
S = 8            # sequence length
H = 64           # hidden size (stands in for bert_hidden_dim=1024)
NH = 4           # attention heads
DH = H // NH     # head dim
I = 128          # FFN intermediate
VOCAB = 100
LAYERS = 2
NUM_LABELS = 3   # tagset_size
OUT_PAD = 128    # lane-dense padded logits width
LN_EPS = 1e-5


def _layernorm(x, g, b):
    mu = jnp.mean(x, axis=-1, keepdims=True)
    var = jnp.mean((x - mu) ** 2, axis=-1, keepdims=True)
    return (x - mu) * jax.lax.rsqrt(var + LN_EPS) * g + b


# ------------------------------ fused Pallas kernel ---------------------------
def fused_forward_kernel(emb_ref, bias_ref, eg_ref, eb_ref,
                         wqkv_ref, bqkv_ref, wo_ref, bo_ref,
                         ln1g_ref, ln1b_ref, w1_ref, b1_ref, w2_ref, b2_ref,
                         ln2g_ref, ln2b_ref,
                         wp_ref, bp_ref, wd_ref, bd_ref, wout_ref, bout_ref,
                         o_ref):
    # Embedding LayerNorm on the flattened [B*S, H] slab (f32).
    x = _layernorm(emb_ref[...].reshape(B * S, H), eg_ref[...], eb_ref[...])
    bias = bias_ref[...]                      # [B, 1, S] additive attention mask
    scale = DH ** -0.5

    for l in range(LAYERS):                   # static unroll over layers
        # ---- fused QKV projection: [B*S, H] @ [H, 3H] -> [B*S, 3H] ----
        xb = x.astype(jnp.bfloat16)
        qkv = jnp.dot(xb, wqkv_ref[l],
                      preferred_element_type=jnp.float32) + bqkv_ref[l]

        # ---- multi-head attention, batched over B per head ----
        ctx_heads = []
        for h in range(NH):                   # static unroll over heads
            qh = qkv[:, h * DH:(h + 1) * DH].astype(jnp.bfloat16).reshape(B, S, DH)
            kh = qkv[:, H + h * DH:H + (h + 1) * DH].astype(jnp.bfloat16).reshape(B, S, DH)
            vh = qkv[:, 2 * H + h * DH:2 * H + (h + 1) * DH].astype(jnp.bfloat16).reshape(B, S, DH)
            s = jnp.einsum('bqd,bkd->bqk', qh, kh,
                           preferred_element_type=jnp.float32) * scale + bias
            s = s - jnp.max(s, axis=-1, keepdims=True)
            p = jnp.exp(s)
            p = p * pl.reciprocal(jnp.sum(p, axis=-1, keepdims=True), approx=True)
            ctx_heads.append(
                jnp.einsum('bqk,bkd->bqd', p.astype(jnp.bfloat16), vh,
                           preferred_element_type=jnp.float32))
        ctx = jnp.concatenate(ctx_heads, axis=-1).reshape(B * S, H)

        # ---- output projection + residual + LN ----
        attn = jnp.dot(ctx.astype(jnp.bfloat16), wo_ref[l],
                       preferred_element_type=jnp.float32) + bo_ref[l]
        x1 = _layernorm(x + attn, ln1g_ref[l], ln1b_ref[l])

        # ---- FFN (GELU) + residual + LN ----
        # TODO(synk): HF RoBERTa uses exact (erf) GELU; tanh approximation kept here.
        ff = jnp.dot(x1.astype(jnp.bfloat16), w1_ref[l],
                     preferred_element_type=jnp.float32) + b1_ref[l]
        ff = jax.nn.gelu(ff)
        ff = jnp.dot(ff.astype(jnp.bfloat16), w2_ref[l],
                     preferred_element_type=jnp.float32) + b2_ref[l]
        x = _layernorm(x1 + ff, ln2g_ref[l], ln2b_ref[l])

    # ---- pooler on the CLS token (outputs_single[1]) ----
    cls = x.reshape(B, S, H)[:, 0, :]                         # [B, H]
    pooled = jnp.tanh(jnp.dot(cls.astype(jnp.bfloat16), wp_ref[...],
                              preferred_element_type=jnp.float32) + bp_ref[...])
    # ---- RobertaClassificationHead: dropout(id) -> dense -> tanh -> dropout(id) -> out_proj ----
    z = jnp.tanh(jnp.dot(pooled.astype(jnp.bfloat16), wd_ref[...],
                         preferred_element_type=jnp.float32) + bd_ref[...])
    o_ref[...] = jnp.dot(z.astype(jnp.bfloat16), wout_ref[...],
                         preferred_element_type=jnp.float32) + bout_ref[...]


# ------------------------------ kernel wrapper --------------------------------
_VMEM_FULL = pl.BlockSpec(memory_space=pltpu.MemorySpace.VMEM)


def fused_forward(params, emb, mask_bias):
    args = (emb, mask_bias,
            params["emb_ln_g"], params["emb_ln_b"],
            params["wqkv"], params["bqkv"], params["wo"], params["bo"],
            params["ln1g"], params["ln1b"], params["w1"], params["b1"],
            params["w2"], params["b2"], params["ln2g"], params["ln2b"],
            params["pooler_w"], params["pooler_b"],
            params["dense_w"], params["dense_b"],
            params["out_w_pad"], params["out_b_pad"])
    logits_pad = pl.pallas_call(
        fused_forward_kernel,
        out_shape=jax.ShapeDtypeStruct((B, OUT_PAD), jnp.float32),
        in_specs=[_VMEM_FULL] * len(args),
        out_specs=_VMEM_FULL,
    )(*args)
    return logits_pad[:, :NUM_LABELS]


# ------------------------------ parameters --------------------------------
def init_params(key):
    keys = iter(jax.random.split(key, 64))

    def nrm(shape, scale=0.02, dtype=jnp.float32):
        return (jax.random.normal(next(keys), shape, jnp.float32) * scale).astype(dtype)

    bf = jnp.bfloat16
    params = {
        "word_emb": nrm((VOCAB, H)),
        "pos_emb": nrm((S + 2, H)),
        "type_emb": nrm((1, H)),
        "emb_ln_g": jnp.ones((1, H), jnp.float32),
        "emb_ln_b": jnp.zeros((1, H), jnp.float32),
        # stacked per-layer encoder weights; matmul weights stored bf16 (MXU inputs)
        "wqkv": nrm((LAYERS, H, 3 * H), dtype=bf),
        "bqkv": jnp.zeros((LAYERS, 1, 3 * H), jnp.float32),
        "wo": nrm((LAYERS, H, H), dtype=bf),
        "bo": jnp.zeros((LAYERS, 1, H), jnp.float32),
        "ln1g": jnp.ones((LAYERS, 1, H), jnp.float32),
        "ln1b": jnp.zeros((LAYERS, 1, H), jnp.float32),
        "w1": nrm((LAYERS, H, I), dtype=bf),
        "b1": jnp.zeros((LAYERS, 1, I), jnp.float32),
        "w2": nrm((LAYERS, I, H), dtype=bf),
        "b2": jnp.zeros((LAYERS, 1, H), jnp.float32),
        "ln2g": jnp.ones((LAYERS, 1, H), jnp.float32),
        "ln2b": jnp.zeros((LAYERS, 1, H), jnp.float32),
        # pooler + classification head
        "pooler_w": nrm((H, H), dtype=bf),
        "pooler_b": jnp.zeros((1, H), jnp.float32),
        "dense_w": nrm((H, H), dtype=bf),
        "dense_b": jnp.zeros((1, H), jnp.float32),
    }
    out_w = nrm((H, NUM_LABELS), dtype=bf)
    out_b = jnp.zeros((1, NUM_LABELS), jnp.float32)
    params["out_w_pad"] = jnp.zeros((H, OUT_PAD), bf).at[:, :NUM_LABELS].set(out_w)
    params["out_b_pad"] = jnp.zeros((1, OUT_PAD), jnp.float32).at[:, :NUM_LABELS].set(out_b)
    return params


# ------------------------------ forward pass --------------------------------
def forward(params, input_ids, input_mask):
    # Embedding gathers stay in plain-JAX glue (no clean tiled BlockSpec form).
    pos_ids = jnp.arange(S, dtype=jnp.int32) + 2   # RoBERTa padding offset
    emb = (params["word_emb"][input_ids]
           + params["pos_emb"][pos_ids][None, :, :]
           + params["type_emb"][0][None, None, :])
    # Additive attention bias (1 -> 0, 0 -> -1e9), shaped [B, 1, S].
    mask_bias = ((1.0 - input_mask.astype(jnp.float32)) * -1e9).reshape(B, 1, S)
    return fused_forward(params, emb, mask_bias)


if __name__ == "__main__":
    key = jax.random.PRNGKey(0)
    pkey, ikey = jax.random.split(key)
    params = init_params(pkey)

    input_ids = jax.random.randint(ikey, (B, S), 0, VOCAB, dtype=jnp.int32)
    input_mask = jnp.ones((B, S), jnp.int32).at[1, 6:].set(0)  # pad tail of sample 1

    logits = jax.jit(forward)(params, input_ids, input_mask)
    jax.block_until_ready(logits)
    assert logits.shape == (B, NUM_LABELS) and logits.dtype == jnp.float32
    assert bool(jnp.all(jnp.isfinite(logits)))
    print("KERNEL_OK")
</pallas_src>

<mosaic_0001>
module attributes {stable_mosaic.version = 11 : i64} {
  func.func @fused_forward_kernel(%arg0: memref<2x8x64xf32, #tpu.memory_space<vmem>>, %arg1: memref<2x1x8xf32, #tpu.memory_space<vmem>>, %arg2: memref<1x64xf32, #tpu.memory_space<vmem>>, %arg3: memref<1x64xf32, #tpu.memory_space<vmem>>, %arg4: memref<2x64x192xbf16, #tpu.memory_space<vmem>>, %arg5: memref<2x1x192xf32, #tpu.memory_space<vmem>>, %arg6: memref<2x64x64xbf16, #tpu.memory_space<vmem>>, %arg7: memref<2x1x64xf32, #tpu.memory_space<vmem>>, %arg8: memref<2x1x64xf32, #tpu.memory_space<vmem>>, %arg9: memref<2x1x64xf32, #tpu.memory_space<vmem>>, %arg10: memref<2x64x128xbf16, #tpu.memory_space<vmem>>, %arg11: memref<2x1x128xf32, #tpu.memory_space<vmem>>, %arg12: memref<2x128x64xbf16, #tpu.memory_space<vmem>>, %arg13: memref<2x1x64xf32, #tpu.memory_space<vmem>>, %arg14: memref<2x1x64xf32, #tpu.memory_space<vmem>>, %arg15: memref<2x1x64xf32, #tpu.memory_space<vmem>>, %arg16: memref<64x64xbf16, #tpu.memory_space<vmem>>, %arg17: memref<1x64xf32, #tpu.memory_space<vmem>>, %arg18: memref<64x64xbf16, #tpu.memory_space<vmem>>, %arg19: memref<1x64xf32, #tpu.memory_space<vmem>>, %arg20: memref<64x128xbf16, #tpu.memory_space<vmem>>, %arg21: memref<1x128xf32, #tpu.memory_space<vmem>>, %arg22: memref<2x128xf32, #tpu.memory_space<vmem>>) attributes {dimension_semantics = [], scalar_prefetch = 0 : i64, scratch_operands = 0 : i64, tpu.core_type = #tpu.core_type<tc>} {
    %c0 = arith.constant 0 : index
    %c0_0 = arith.constant 0 : index
    %c0_1 = arith.constant 0 : index
    %0 = vector.load %arg0[%c0, %c0_0, %c0_1] : memref<2x8x64xf32, #tpu.memory_space<vmem>>, vector<2x8x64xf32>
    %1 = vector.shape_cast %0 : vector<2x8x64xf32> to vector<16x64xf32>
    %c0_2 = arith.constant 0 : index
    %c0_3 = arith.constant 0 : index
    %2 = vector.load %arg2[%c0_2, %c0_3] : memref<1x64xf32, #tpu.memory_space<vmem>>, vector<1x64xf32>
    %c0_4 = arith.constant 0 : index
    %c0_5 = arith.constant 0 : index
    %3 = vector.load %arg3[%c0_4, %c0_5] : memref<1x64xf32, #tpu.memory_space<vmem>>, vector<1x64xf32>
    %cst = arith.constant dense<0.000000e+00> : vector<16xf32>
    %4 = vector.multi_reduction <add>, %1, %cst [1] : vector<16x64xf32> to vector<16xf32>
    %5 = vector.shape_cast %4 : vector<16xf32> to vector<16x1xf32>
    %cst_6 = arith.constant 6.400000e+01 : f32
    %6 = vector.broadcast %cst_6 : f32 to vector<16x1xf32>
    %7 = arith.divf %5, %6 : vector<16x1xf32>
    %8 = vector.broadcast %7 : vector<16x1xf32> to vector<16x64xf32>
    %9 = arith.subf %1, %8 : vector<16x64xf32>
    %10 = arith.mulf %9, %9 : vector<16x64xf32>
    %cst_7 = arith.constant dense<0.000000e+00> : vector<16xf32>
    %11 = vector.multi_reduction <add>, %10, %cst_7 [1] : vector<16x64xf32> to vector<16xf32>
    %12 = vector.shape_cast %11 : vector<16xf32> to vector<16x1xf32>
    %cst_8 = arith.constant 6.400000e+01 : f32
    %13 = vector.broadcast %cst_8 : f32 to vector<16x1xf32>
    %14 = arith.divf %12, %13 : vector<16x1xf32>
    %15 = vector.broadcast %7 : vector<16x1xf32> to vector<16x64xf32>
    %16 = arith.subf %1, %15 : vector<16x64xf32>
    %cst_9 = arith.constant 9.99999974E-6 : f32
    %17 = vector.broadcast %cst_9 : f32 to vector<16x1xf32>
    %18 = arith.addf %14, %17 : vector<16x1xf32>
    %19 = math.rsqrt %18 : vector<16x1xf32>
    %20 = vector.broadcast %19 : vector<16x1xf32> to vector<16x64xf32>
    %21 = arith.mulf %16, %20 : vector<16x64xf32>
    %22 = vector.broadcast %2 : vector<1x64xf32> to vector<16x64xf32>
    %23 = arith.mulf %21, %22 : vector<16x64xf32>
    %24 = vector.broadcast %3 : vector<1x64xf32> to vector<16x64xf32>
    %25 = arith.addf %23, %24 : vector<16x64xf32>
    %c0_10 = arith.constant 0 : index
    %c0_11 = arith.constant 0 : index
    %c0_12 = arith.constant 0 : index
    %26 = vector.load %arg1[%c0_10, %c0_11, %c0_12] : memref<2x1x8xf32, #tpu.memory_space<vmem>>, vector<2x1x8xf32>
    %27 = arith.truncf %25 : vector<16x64xf32> to vector<16x64xbf16>
    %c0_13 = arith.constant 0 : index
    %c0_14 = arith.constant 0 : index
    %c0_15 = arith.constant 0 : index
    %28 = vector.load %arg4[%c0_13, %c0_14, %c0_15] : memref<2x64x192xbf16, #tpu.memory_space<vmem>>, vector<1x64x192xbf16>
    %29 = vector.shape_cast %28 : vector<1x64x192xbf16> to vector<64x192xbf16>
    %cst_16 = arith.constant dense<0.000000e+00> : vector<16x192xf32>
    %30 = tpu.matmul %27, %29, %cst_16 {dimension_numbers = #tpu.dot_dimension_numbers<[1], [0], [0], [1], [0, 0, 1, 1], [], []>} : vector<16x64xbf16>, vector<64x192xbf16>, vector<16x192xf32> -> vector<16x192xf32>
    %c0_17 = arith.constant 0 : index
    %c0_18 = arith.constant 0 : index
    %c0_19 = arith.constant 0 : index
    %31 = vector.load %arg5[%c0_17, %c0_18, %c0_19] : memref<2x1x192xf32, #tpu.memory_space<vmem>>, vector<1x1x192xf32>
    %32 = vector.shape_cast %31 : vector<1x1x192xf32> to vector<1x192xf32>
    %33 = vector.broadcast %32 : vector<1x192xf32> to vector<16x192xf32>
    %34 = arith.addf %30, %33 : vector<16x192xf32>
    %35 = vector.extract_strided_slice %34 {offsets = [0, 0], sizes = [16, 16], strides = [1, 1]} : vector<16x192xf32> to vector<16x16xf32>
    %36 = arith.truncf %35 : vector<16x16xf32> to vector<16x16xbf16>
    %37 = vector.shape_cast %36 : vector<16x16xbf16> to vector<2x8x16xbf16>
    %38 = vector.extract_strided_slice %34 {offsets = [0, 64], sizes = [16, 16], strides = [1, 1]} : vector<16x192xf32> to vector<16x16xf32>
    %39 = arith.truncf %38 : vector<16x16xf32> to vector<16x16xbf16>
    %40 = vector.shape_cast %39 : vector<16x16xbf16> to vector<2x8x16xbf16>
    %41 = vector.extract_strided_slice %34 {offsets = [0, 128], sizes = [16, 16], strides = [1, 1]} : vector<16x192xf32> to vector<16x16xf32>
    %42 = arith.truncf %41 : vector<16x16xf32> to vector<16x16xbf16>
    %43 = vector.shape_cast %42 : vector<16x16xbf16> to vector<2x8x16xbf16>
    "tpu.trace_start"() <{level = 10 : i32, message = "bqd,bkd->bqk"}> : () -> ()
    %cst_20 = arith.constant dense<0.000000e+00> : vector<2x8x8xf32>
    %44 = tpu.matmul %37, %40, %cst_20 {dimension_numbers = #tpu.dot_dimension_numbers<[2], [2], [1], [1], [0, 0, 0, 1, 1, 1], [0], [0]>} : vector<2x8x16xbf16>, vector<2x8x16xbf16>, vector<2x8x8xf32> -> vector<2x8x8xf32>
    "tpu.trace_stop"() : () -> ()
    %cst_21 = arith.constant 2.500000e-01 : f32
    %45 = vector.broadcast %cst_21 : f32 to vector<2x8x8xf32>
    %46 = arith.mulf %44, %45 : vector<2x8x8xf32>
    %47 = vector.broadcast %26 : vector<2x1x8xf32> to vector<2x8x8xf32>
    %48 = arith.addf %46, %47 : vector<2x8x8xf32>
    %cst_22 = arith.constant dense<0xFF800000> : vector<2x8xf32>
    %49 = vector.multi_reduction <maximumf>, %48, %cst_22 [2] : vector<2x8x8xf32> to vector<2x8xf32>
    %50 = vector.shape_cast %49 : vector<2x8xf32> to vector<2x8x1xf32>
    %51 = vector.broadcast %50 : vector<2x8x1xf32> to vector<2x8x8xf32>
    %52 = arith.subf %48, %51 : vector<2x8x8xf32>
    %53 = math.exp %52 : vector<2x8x8xf32>
    %cst_23 = arith.constant dense<0.000000e+00> : vector<2x8xf32>
    %54 = vector.multi_reduction <add>, %53, %cst_23 [2] : vector<2x8x8xf32> to vector<2x8xf32>
    %55 = vector.shape_cast %54 : vector<2x8xf32> to vector<2x8x1xf32>
    %56 = tpu.reciprocal %55 {approx = true} : vector<2x8x1xf32> -> vector<2x8x1xf32>
    %57 = vector.broadcast %56 : vector<2x8x1xf32> to vector<2x8x8xf32>
    %58 = arith.mulf %53, %57 : vector<2x8x8xf32>
    %59 = arith.truncf %58 : vector<2x8x8xf32> to vector<2x8x8xbf16>
    "tpu.trace_start"() <{level = 10 : i32, message = "bqk,bkd->bqd"}> : () -> ()
    %cst_24 = arith.constant dense<0.000000e+00> : vector<2x8x16xf32>
    %60 = tpu.matmul %59, %43, %cst_24 {dimension_numbers = #tpu.dot_dimension_numbers<[2], [1], [1], [2], [0, 0, 0, 1, 1, 2], [0], [0]>} : vector<2x8x8xbf16>, vector<2x8x16xbf16>, vector<2x8x16xf32> -> vector<2x8x16xf32>
    "tpu.trace_stop"() : () -> ()
    %61 = vector.extract_strided_slice %34 {offsets = [0, 16], sizes = [16, 16], strides = [1, 1]} : vector<16x192xf32> to vector<16x16xf32>
    %62 = arith.truncf %61 : vector<16x16xf32> to vector<16x16xbf16>
    %63 = vector.shape_cast %62 : vector<16x16xbf16> to vector<2x8x16xbf16>
    %64 = vector.extract_strided_slice %34 {offsets = [0, 80], sizes = [16, 16], strides = [1, 1]} : vector<16x192xf32> to vector<16x16xf32>
    %65 = arith.truncf %64 : vector<16x16xf32> to vector<16x16xbf16>
    %66 = vector.shape_cast %65 : vector<16x16xbf16> to vector<2x8x16xbf16>
    %67 = vector.extract_strided_slice %34 {offsets = [0, 144], sizes = [16, 16], strides = [1, 1]} : vector<16x192xf32> to vector<16x16xf32>
    %68 = arith.truncf %67 : vector<16x16xf32> to vector<16x16xbf16>
    %69 = vector.shape_cast %68 : vector<16x16xbf16> to vector<2x8x16xbf16>
    "tpu.trace_start"() <{level = 10 : i32, message = "bqd,bkd->bqk"}> : () -> ()
    %cst_25 = arith.constant dense<0.000000e+00> : vector<2x8x8xf32>
    %70 = tpu.matmul %63, %66, %cst_25 {dimension_numbers = #tpu.dot_dimension_numbers<[2], [2], [1], [1], [0, 0, 0, 1, 1, 1], [0], [0]>} : vector<2x8x16xbf16>, vector<2x8x16xbf16>, vector<2x8x8xf32> -> vector<2x8x8xf32>
    "tpu.trace_stop"() : () -> ()
    %cst_26 = arith.constant 2.500000e-01 : f32
    %71 = vector.broadcast %cst_26 : f32 to vector<2x8x8xf32>
    %72 = arith.mulf %70, %71 : vector<2x8x8xf32>
    %73 = vector.broadcast %26 : vector<2x1x8xf32> to vector<2x8x8xf32>
    %74 = arith.addf %72, %73 : vector<2x8x8xf32>
    %cst_27 = arith.constant dense<0xFF800000> : vector<2x8xf32>
    %75 = vector.multi_reduction <maximumf>, %74, %cst_27 [2] : vector<2x8x8xf32> to vector<2x8xf32>
    %76 = vector.shape_cast %75 : vector<2x8xf32> to vector<2x8x1xf32>
    %77 = vector.broadcast %76 : vector<2x8x1xf32> to vector<2x8x8xf32>
    %78 = arith.subf %74, %77 : vector<2x8x8xf32>
    %79 = math.exp %78 : vector<2x8x8xf32>
    %cst_28 = arith.constant dense<0.000000e+00> : vector<2x8xf32>
    %80 = vector.multi_reduction <add>, %79, %cst_28 [2] : vector<2x8x8xf32> to vector<2x8xf32>
    %81 = vector.shape_cast %80 : vector<2x8xf32> to vector<2x8x1xf32>
    %82 = tpu.reciprocal %81 {approx = true} : vector<2x8x1xf32> -> vector<2x8x1xf32>
    %83 = vector.broadcast %82 : vector<2x8x1xf32> to vector<2x8x8xf32>
    %84 = arith.mulf %79, %83 : vector<2x8x8xf32>
    %85 = arith.truncf %84 : vector<2x8x8xf32> to vector<2x8x8xbf16>
    "tpu.trace_start"() <{level = 10 : i32, message = "bqk,bkd->bqd"}> : () -> ()
    %cst_29 = arith.constant dense<0.000000e+00> : vector<2x8x16xf32>
    %86 = tpu.matmul %85, %69, %cst_29 {dimension_numbers = #tpu.dot_dimension_numbers<[2], [1], [1], [2], [0, 0, 0, 1, 1, 2], [0], [0]>} : vector<2x8x8xbf16>, vector<2x8x16xbf16>, vector<2x8x16xf32> -> vector<2x8x16xf32>
    "tpu.trace_stop"() : () -> ()
    %87 = vector.extract_strided_slice %34 {offsets = [0, 32], sizes = [16, 16], strides = [1, 1]} : vector<16x192xf32> to vector<16x16xf32>
    %88 = arith.truncf %87 : vector<16x16xf32> to vector<16x16xbf16>
    %89 = vector.shape_cast %88 : vector<16x16xbf16> to vector<2x8x16xbf16>
    %90 = vector.extract_strided_slice %34 {offsets = [0, 96], sizes = [16, 16], strides = [1, 1]} : vector<16x192xf32> to vector<16x16xf32>
    %91 = arith.truncf %90 : vector<16x16xf32> to vector<16x16xbf16>
    %92 = vector.shape_cast %91 : vector<16x16xbf16> to vector<2x8x16xbf16>
    %93 = vector.extract_strided_slice %34 {offsets = [0, 160], sizes = [16, 16], strides = [1, 1]} : vector<16x192xf32> to vector<16x16xf32>
    %94 = arith.truncf %93 : vector<16x16xf32> to vector<16x16xbf16>
    %95 = vector.shape_cast %94 : vector<16x16xbf16> to vector<2x8x16xbf16>
    "tpu.trace_start"() <{level = 10 : i32, message = "bqd,bkd->bqk"}> : () -> ()
    %cst_30 = arith.constant dense<0.000000e+00> : vector<2x8x8xf32>
    %96 = tpu.matmul %89, %92, %cst_30 {dimension_numbers = #tpu.dot_dimension_numbers<[2], [2], [1], [1], [0, 0, 0, 1, 1, 1], [0], [0]>} : vector<2x8x16xbf16>, vector<2x8x16xbf16>, vector<2x8x8xf32> -> vector<2x8x8xf32>
    "tpu.trace_stop"() : () -> ()
    %cst_31 = arith.constant 2.500000e-01 : f32
    %97 = vector.broadcast %cst_31 : f32 to vector<2x8x8xf32>
    %98 = arith.mulf %96, %97 : vector<2x8x8xf32>
    %99 = vector.broadcast %26 : vector<2x1x8xf32> to vector<2x8x8xf32>
    %100 = arith.addf %98, %99 : vector<2x8x8xf32>
    %cst_32 = arith.constant dense<0xFF800000> : vector<2x8xf32>
    %101 = vector.multi_reduction <maximumf>, %100, %cst_32 [2] : vector<2x8x8xf32> to vector<2x8xf32>
    %102 = vector.shape_cast %101 : vector<2x8xf32> to vector<2x8x1xf32>
    %103 = vector.broadcast %102 : vector<2x8x1xf32> to vector<2x8x8xf32>
    %104 = arith.subf %100, %103 : vector<2x8x8xf32>
    %105 = math.exp %104 : vector<2x8x8xf32>
    %cst_33 = arith.constant dense<0.000000e+00> : vector<2x8xf32>
    %106 = vector.multi_reduction <add>, %105, %cst_33 [2] : vector<2x8x8xf32> to vector<2x8xf32>
    %107 = vector.shape_cast %106 : vector<2x8xf32> to vector<2x8x1xf32>
    %108 = tpu.reciprocal %107 {approx = true} : vector<2x8x1xf32> -> vector<2x8x1xf32>
    %109 = vector.broadcast %108 : vector<2x8x1xf32> to vector<2x8x8xf32>
    %110 = arith.mulf %105, %109 : vector<2x8x8xf32>
    %111 = arith.truncf %110 : vector<2x8x8xf32> to vector<2x8x8xbf16>
    "tpu.trace_start"() <{level = 10 : i32, message = "bqk,bkd->bqd"}> : () -> ()
    %cst_34 = arith.constant dense<0.000000e+00> : vector<2x8x16xf32>
    %112 = tpu.matmul %111, %95, %cst_34 {dimension_numbers = #tpu.dot_dimension_numbers<[2], [1], [1], [2], [0, 0, 0, 1, 1, 2], [0], [0]>} : vector<2x8x8xbf16>, vector<2x8x16xbf16>, vector<2x8x16xf32> -> vector<2x8x16xf32>
    "tpu.trace_stop"() : () -> ()
    %113 = vector.extract_strided_slice %34 {offsets = [0, 48], sizes = [16, 16], strides = [1, 1]} : vector<16x192xf32> to vector<16x16xf32>
    %114 = arith.truncf %113 : vector<16x16xf32> to vector<16x16xbf16>
    %115 = vector.shape_cast %114 : vector<16x16xbf16> to vector<2x8x16xbf16>
    %116 = vector.extract_strided_slice %34 {offsets = [0, 112], sizes = [16, 16], strides = [1, 1]} : vector<16x192xf32> to vector<16x16xf32>
    %117 = arith.truncf %116 : vector<16x16xf32> to vector<16x16xbf16>
    %118 = vector.shape_cast %117 : vector<16x16xbf16> to vector<2x8x16xbf16>
    %119 = vector.extract_strided_slice %34 {offsets = [0, 176], sizes = [16, 16], strides = [1, 1]} : vector<16x192xf32> to vector<16x16xf32>
    %120 = arith.truncf %119 : vector<16x16xf32> to vector<16x16xbf16>
    %121 = vector.shape_cast %120 : vector<16x16xbf16> to vector<2x8x16xbf16>
    "tpu.trace_start"() <{level = 10 : i32, message = "bqd,bkd->bqk"}> : () -> ()
    %cst_35 = arith.constant dense<0.000000e+00> : vector<2x8x8xf32>
    %122 = tpu.matmul %115, %118, %cst_35 {dimension_numbers = #tpu.dot_dimension_numbers<[2], [2], [1], [1], [0, 0, 0, 1, 1, 1], [0], [0]>} : vector<2x8x16xbf16>, vector<2x8x16xbf16>, vector<2x8x8xf32> -> vector<2x8x8xf32>
    "tpu.trace_stop"() : () -> ()
    %cst_36 = arith.constant 2.500000e-01 : f32
    %123 = vector.broadcast %cst_36 : f32 to vector<2x8x8xf32>
    %124 = arith.mulf %122, %123 : vector<2x8x8xf32>
    %125 = vector.broadcast %26 : vector<2x1x8xf32> to vector<2x8x8xf32>
    %126 = arith.addf %124, %125 : vector<2x8x8xf32>
    %cst_37 = arith.constant dense<0xFF800000> : vector<2x8xf32>
    %127 = vector.multi_reduction <maximumf>, %126, %cst_37 [2] : vector<2x8x8xf32> to vector<2x8xf32>
    %128 = vector.shape_cast %127 : vector<2x8xf32> to vector<2x8x1xf32>
    %129 = vector.broadcast %128 : vector<2x8x1xf32> to vector<2x8x8xf32>
    %130 = arith.subf %126, %129 : vector<2x8x8xf32>
    %131 = math.exp %130 : vector<2x8x8xf32>
    %cst_38 = arith.constant dense<0.000000e+00> : vector<2x8xf32>
    %132 = vector.multi_reduction <add>, %131, %cst_38 [2] : vector<2x8x8xf32> to vector<2x8xf32>
    %133 = vector.shape_cast %132 : vector<2x8xf32> to vector<2x8x1xf32>
    %134 = tpu.reciprocal %133 {approx = true} : vector<2x8x1xf32> -> vector<2x8x1xf32>
    %135 = vector.broadcast %134 : vector<2x8x1xf32> to vector<2x8x8xf32>
    %136 = arith.mulf %131, %135 : vector<2x8x8xf32>
    %137 = arith.truncf %136 : vector<2x8x8xf32> to vector<2x8x8xbf16>
    "tpu.trace_start"() <{level = 10 : i32, message = "bqk,bkd->bqd"}> : () -> ()
    %cst_39 = arith.constant dense<0.000000e+00> : vector<2x8x16xf32>
    %138 = tpu.matmul %137, %121, %cst_39 {dimension_numbers = #tpu.dot_dimension_numbers<[2], [1], [1], [2], [0, 0, 0, 1, 1, 2], [0], [0]>} : vector<2x8x8xbf16>, vector<2x8x16xbf16>, vector<2x8x16xf32> -> vector<2x8x16xf32>
    "tpu.trace_stop"() : () -> ()
    %139 = tpu.concatenate %60, %86, %112, %138 in 2 : vector<2x8x16xf32>, vector<2x8x16xf32>, vector<2x8x16xf32>, vector<2x8x16xf32> -> vector<2x8x64xf32>
    %140 = vector.shape_cast %139 : vector<2x8x64xf32> to vector<16x64xf32>
    %141 = arith.truncf %140 : vector<16x64xf32> to vector<16x64xbf16>
    %c0_40 = arith.constant 0 : index
    %c0_41 = arith.constant 0 : index
    %c0_42 = arith.constant 0 : index
    %142 = vector.load %arg6[%c0_40, %c0_41, %c0_42] : memref<2x64x64xbf16, #tpu.memory_space<vmem>>, vector<1x64x64xbf16>
    %143 = vector.shape_cast %142 : vector<1x64x64xbf16> to vector<64x64xbf16>
    %cst_43 = arith.constant dense<0.000000e+00> : vector<16x64xf32>
    %144 = tpu.matmul %141, %143, %cst_43 {dimension_numbers = #tpu.dot_dimension_numbers<[1], [0], [0], [1], [0, 0, 1, 1], [], []>} : vector<16x64xbf16>, vector<64x64xbf16>, vector<16x64xf32> -> vector<16x64xf32>
    %c0_44 = arith.constant 0 : index
    %c0_45 = arith.constant 0 : index
    %c0_46 = arith.constant 0 : index
    %145 = vector.load %arg7[%c0_44, %c0_45, %c0_46] : memref<2x1x64xf32, #tpu.memory_space<vmem>>, vector<1x1x64xf32>
    %146 = vector.shape_cast %145 : vector<1x1x64xf32> to vector<1x64xf32>
    %147 = vector.broadcast %146 : vector<1x64xf32> to vector<16x64xf32>
    %148 = arith.addf %144, %147 : vector<16x64xf32>
    %149 = arith.addf %25, %148 : vector<16x64xf32>
    %c0_47 = arith.constant 0 : index
    %c0_48 = arith.constant 0 : index
    %c0_49 = arith.constant 0 : index
    %150 = vector.load %arg8[%c0_47, %c0_48, %c0_49] : memref<2x1x64xf32, #tpu.memory_space<vmem>>, vector<1x1x64xf32>
    %151 = vector.shape_cast %150 : vector<1x1x64xf32> to vector<1x64xf32>
    %c0_50 = arith.constant 0 : index
    %c0_51 = arith.constant 0 : index
    %c0_52 = arith.constant 0 : index
    %152 = vector.load %arg9[%c0_50, %c0_51, %c0_52] : memref<2x1x64xf32, #tpu.memory_space<vmem>>, vector<1x1x64xf32>
    %153 = vector.shape_cast %152 : vector<1x1x64xf32> to vector<1x64xf32>
    %cst_53 = arith.constant dense<0.000000e+00> : vector<16xf32>
    %154 = vector.multi_reduction <add>, %149, %cst_53 [1] : vector<16x64xf32> to vector<16xf32>
    %155 = vector.shape_cast %154 : vector<16xf32> to vector<16x1xf32>
    %cst_54 = arith.constant 6.400000e+01 : f32
    %156 = vector.broadcast %cst_54 : f32 to vector<16x1xf32>
    %157 = arith.divf %155, %156 : vector<16x1xf32>
    %158 = vector.broadcast %157 : vector<16x1xf32> to vector<16x64xf32>
    %159 = arith.subf %149, %158 : vector<16x64xf32>
    %160 = arith.mulf %159, %159 : vector<16x64xf32>
    %cst_55 = arith.constant dense<0.000000e+00> : vector<16xf32>
    %161 = vector.multi_reduction <add>, %160, %cst_55 [1] : vector<16x64xf32> to vector<16xf32>
    %162 = vector.shape_cast %161 : vector<16xf32> to vector<16x1xf32>
    %cst_56 = arith.constant 6.400000e+01 : f32
    %163 = vector.broadcast %cst_56 : f32 to vector<16x1xf32>
    %164 = arith.divf %162, %163 : vector<16x1xf32>
    %165 = vector.broadcast %157 : vector<16x1xf32> to vector<16x64xf32>
    %166 = arith.subf %149, %165 : vector<16x64xf32>
    %cst_57 = arith.constant 9.99999974E-6 : f32
    %167 = vector.broadcast %cst_57 : f32 to vector<16x1xf32>
    %168 = arith.addf %164, %167 : vector<16x1xf32>
    %169 = math.rsqrt %168 : vector<16x1xf32>
    %170 = vector.broadcast %169 : vector<16x1xf32> to vector<16x64xf32>
    %171 = arith.mulf %166, %170 : vector<16x64xf32>
    %172 = vector.broadcast %151 : vector<1x64xf32> to vector<16x64xf32>
    %173 = arith.mulf %171, %172 : vector<16x64xf32>
    %174 = vector.broadcast %153 : vector<1x64xf32> to vector<16x64xf32>
    %175 = arith.addf %173, %174 : vector<16x64xf32>
    %176 = arith.truncf %175 : vector<16x64xf32> to vector<16x64xbf16>
    %c0_58 = arith.constant 0 : index
    %c0_59 = arith.constant 0 : index
    %c0_60 = arith.constant 0 : index
    %177 = vector.load %arg10[%c0_58, %c0_59, %c0_60] : memref<2x64x128xbf16, #tpu.memory_space<vmem>>, vector<1x64x128xbf16>
    %178 = vector.shape_cast %177 : vector<1x64x128xbf16> to vector<64x128xbf16>
    %cst_61 = arith.constant dense<0.000000e+00> : vector<16x128xf32>
    %179 = tpu.matmul %176, %178, %cst_61 {dimension_numbers = #tpu.dot_dimension_numbers<[1], [0], [0], [1], [0, 0, 1, 1], [], []>} : vector<16x64xbf16>, vector<64x128xbf16>, vector<16x128xf32> -> vector<16x128xf32>
    %c0_62 = arith.constant 0 : index
    %c0_63 = arith.constant 0 : index
    %c0_64 = arith.constant 0 : index
    %180 = vector.load %arg11[%c0_62, %c0_63, %c0_64] : memref<2x1x128xf32, #tpu.memory_space<vmem>>, vector<1x1x128xf32>
    %181 = vector.shape_cast %180 : vector<1x1x128xf32> to vector<1x128xf32>
    %182 = vector.broadcast %181 : vector<1x128xf32> to vector<16x128xf32>
    %183 = arith.addf %179, %182 : vector<16x128xf32>
    %184 = arith.mulf %183, %183 : vector<16x128xf32>
    %185 = arith.mulf %183, %184 : vector<16x128xf32>
    %cst_65 = arith.constant 4.471500e-02 : f32
    %186 = vector.broadcast %cst_65 : f32 to vector<16x128xf32>
    %187 = arith.mulf %186, %185 : vector<16x128xf32>
    %188 = arith.addf %183, %187 : vector<16x128xf32>
    %cst_66 = arith.constant 0.797884583 : f32
    %189 = vector.broadcast %cst_66 : f32 to vector<16x128xf32>
    %190 = arith.mulf %189, %188 : vector<16x128xf32>
    %191 = math.tanh %190 : vector<16x128xf32>
    %cst_67 = arith.constant 1.000000e+00 : f32
    %192 = vector.broadcast %cst_67 : f32 to vector<16x128xf32>
    %193 = arith.addf %192, %191 : vector<16x128xf32>
    %cst_68 = arith.constant 5.000000e-01 : f32
    %194 = vector.broadcast %cst_68 : f32 to vector<16x128xf32>
    %195 = arith.mulf %194, %193 : vector<16x128xf32>
    %196 = arith.mulf %183, %195 : vector<16x128xf32>
    %197 = arith.truncf %196 : vector<16x128xf32> to vector<16x128xbf16>
    %c0_69 = arith.constant 0 : index
    %c0_70 = arith.constant 0 : index
    %c0_71 = arith.constant 0 : index
    %198 = vector.load %arg12[%c0_69, %c0_70, %c0_71] : memref<2x128x64xbf16, #tpu.memory_space<vmem>>, vector<1x128x64xbf16>
    %199 = vector.shape_cast %198 : vector<1x128x64xbf16> to vector<128x64xbf16>
    %cst_72 = arith.constant dense<0.000000e+00> : vector<16x64xf32>
    %200 = tpu.matmul %197, %199, %cst_72 {dimension_numbers = #tpu.dot_dimension_numbers<[1], [0], [0], [1], [0, 0, 1, 1], [], []>} : vector<16x128xbf16>, vector<128x64xbf16>, vector<16x64xf32> -> vector<16x64xf32>
    %c0_73 = arith.constant 0 : index
    %c0_74 = arith.constant 0 : index
    %c0_75 = arith.constant 0 : index
    %201 = vector.load %arg13[%c0_73, %c0_74, %c0_75] : memref<2x1x64xf32, #tpu.memory_space<vmem>>, vector<1x1x64xf32>
    %202 = vector.shape_cast %201 : vector<1x1x64xf32> to vector<1x64xf32>
    %203 = vector.broadcast %202 : vector<1x64xf32> to vector<16x64xf32>
    %204 = arith.addf %200, %203 : vector<16x64xf32>
    %205 = arith.addf %175, %204 : vector<16x64xf32>
    %c0_76 = arith.constant 0 : index
    %c0_77 = arith.constant 0 : index
    %c0_78 = arith.constant 0 : index
    %206 = vector.load %arg14[%c0_76, %c0_77, %c0_78] : memref<2x1x64xf32, #tpu.memory_space<vmem>>, vector<1x1x64xf32>
    %207 = vector.shape_cast %206 : vector<1x1x64xf32> to vector<1x64xf32>
    %c0_79 = arith.constant 0 : index
    %c0_80 = arith.constant 0 : index
    %c0_81 = arith.constant 0 : index
    %208 = vector.load %arg15[%c0_79, %c0_80, %c0_81] : memref<2x1x64xf32, #tpu.memory_space<vmem>>, vector<1x1x64xf32>
    %209 = vector.shape_cast %208 : vector<1x1x64xf32> to vector<1x64xf32>
    %cst_82 = arith.constant dense<0.000000e+00> : vector<16xf32>
    %210 = vector.multi_reduction <add>, %205, %cst_82 [1] : vector<16x64xf32> to vector<16xf32>
    %211 = vector.shape_cast %210 : vector<16xf32> to vector<16x1xf32>
    %cst_83 = arith.constant 6.400000e+01 : f32
    %212 = vector.broadcast %cst_83 : f32 to vector<16x1xf32>
    %213 = arith.divf %211, %212 : vector<16x1xf32>
    %214 = vector.broadcast %213 : vector<16x1xf32> to vector<16x64xf32>
    %215 = arith.subf %205, %214 : vector<16x64xf32>
    %216 = arith.mulf %215, %215 : vector<16x64xf32>
    %cst_84 = arith.constant dense<0.000000e+00> : vector<16xf32>
    %217 = vector.multi_reduction <add>, %216, %cst_84 [1] : vector<16x64xf32> to vector<16xf32>
    %218 = vector.shape_cast %217 : vector<16xf32> to vector<16x1xf32>
    %cst_85 = arith.constant 6.400000e+01 : f32
    %219 = vector.broadcast %cst_85 : f32 to vector<16x1xf32>
    %220 = arith.divf %218, %219 : vector<16x1xf32>
    %221 = vector.broadcast %213 : vector<16x1xf32> to vector<16x64xf32>
    %222 = arith.subf %205, %221 : vector<16x64xf32>
    %cst_86 = arith.constant 9.99999974E-6 : f32
    %223 = vector.broadcast %cst_86 : f32 to vector<16x1xf32>
    %224 = arith.addf %220, %223 : vector<16x1xf32>
    %225 = math.rsqrt %224 : vector<16x1xf32>
    %226 = vector.broadcast %225 : vector<16x1xf32> to vector<16x64xf32>
    %227 = arith.mulf %222, %226 : vector<16x64xf32>
    %228 = vector.broadcast %207 : vector<1x64xf32> to vector<16x64xf32>
    %229 = arith.mulf %227, %228 : vector<16x64xf32>
    %230 = vector.broadcast %209 : vector<1x64xf32> to vector<16x64xf32>
    %231 = arith.addf %229, %230 : vector<16x64xf32>
    %232 = arith.truncf %231 : vector<16x64xf32> to vector<16x64xbf16>
    %c1 = arith.constant 1 : index
    %c0_87 = arith.constant 0 : index
    %c0_88 = arith.constant 0 : index
    %233 = vector.load %arg4[%c1, %c0_87, %c0_88] : memref<2x64x192xbf16, #tpu.memory_space<vmem>>, vector<1x64x192xbf16>
    %234 = vector.shape_cast %233 : vector<1x64x192xbf16> to vector<64x192xbf16>
    %cst_89 = arith.constant dense<0.000000e+00> : vector<16x192xf32>
    %235 = tpu.matmul %232, %234, %cst_89 {dimension_numbers = #tpu.dot_dimension_numbers<[1], [0], [0], [1], [0, 0, 1, 1], [], []>} : vector<16x64xbf16>, vector<64x192xbf16>, vector<16x192xf32> -> vector<16x192xf32>
    %c1_90 = arith.constant 1 : index
    %c0_91 = arith.constant 0 : index
    %c0_92 = arith.constant 0 : index
    %236 = vector.load %arg5[%c1_90, %c0_91, %c0_92] : memref<2x1x192xf32, #tpu.memory_space<vmem>>, vector<1x1x192xf32>
    %237 = vector.shape_cast %236 : vector<1x1x192xf32> to vector<1x192xf32>
    %238 = vector.broadcast %237 : vector<1x192xf32> to vector<16x192xf32>
    %239 = arith.addf %235, %238 : vector<16x192xf32>
    %240 = vector.extract_strided_slice %239 {offsets = [0, 0], sizes = [16, 16], strides = [1, 1]} : vector<16x192xf32> to vector<16x16xf32>
    %241 = arith.truncf %240 : vector<16x16xf32> to vector<16x16xbf16>
    %242 = vector.shape_cast %241 : vector<16x16xbf16> to vector<2x8x16xbf16>
    %243 = vector.extract_strided_slice %239 {offsets = [0, 64], sizes = [16, 16], strides = [1, 1]} : vector<16x192xf32> to vector<16x16xf32>
    %244 = arith.truncf %243 : vector<16x16xf32> to vector<16x16xbf16>
    %245 = vector.shape_cast %244 : vector<16x16xbf16> to vector<2x8x16xbf16>
    %246 = vector.extract_strided_slice %239 {offsets = [0, 128], sizes = [16, 16], strides = [1, 1]} : vector<16x192xf32> to vector<16x16xf32>
    %247 = arith.truncf %246 : vector<16x16xf32> to vector<16x16xbf16>
    %248 = vector.shape_cast %247 : vector<16x16xbf16> to vector<2x8x16xbf16>
    "tpu.trace_start"() <{level = 10 : i32, message = "bqd,bkd->bqk"}> : () -> ()
    %cst_93 = arith.constant dense<0.000000e+00> : vector<2x8x8xf32>
    %249 = tpu.matmul %242, %245, %cst_93 {dimension_numbers = #tpu.dot_dimension_numbers<[2], [2], [1], [1], [0, 0, 0, 1, 1, 1], [0], [0]>} : vector<2x8x16xbf16>, vector<2x8x16xbf16>, vector<2x8x8xf32> -> vector<2x8x8xf32>
    "tpu.trace_stop"() : () -> ()
    %cst_94 = arith.constant 2.500000e-01 : f32
    %250 = vector.broadcast %cst_94 : f32 to vector<2x8x8xf32>
    %251 = arith.mulf %249, %250 : vector<2x8x8xf32>
    %252 = vector.broadcast %26 : vector<2x1x8xf32> to vector<2x8x8xf32>
    %253 = arith.addf %251, %252 : vector<2x8x8xf32>
    %cst_95 = arith.constant dense<0xFF800000> : vector<2x8xf32>
    %254 = vector.multi_reduction <maximumf>, %253, %cst_95 [2] : vector<2x8x8xf32> to vector<2x8xf32>
    %255 = vector.shape_cast %254 : vector<2x8xf32> to vector<2x8x1xf32>
    %256 = vector.broadcast %255 : vector<2x8x1xf32> to vector<2x8x8xf32>
    %257 = arith.subf %253, %256 : vector<2x8x8xf32>
    %258 = math.exp %257 : vector<2x8x8xf32>
    %cst_96 = arith.constant dense<0.000000e+00> : vector<2x8xf32>
    %259 = vector.multi_reduction <add>, %258, %cst_96 [2] : vector<2x8x8xf32> to vector<2x8xf32>
    %260 = vector.shape_cast %259 : vector<2x8xf32> to vector<2x8x1xf32>
    %261 = tpu.reciprocal %260 {approx = true} : vector<2x8x1xf32> -> vector<2x8x1xf32>
    %262 = vector.broadcast %261 : vector<2x8x1xf32> to vector<2x8x8xf32>
    %263 = arith.mulf %258, %262 : vector<2x8x8xf32>
    %264 = arith.truncf %263 : vector<2x8x8xf32> to vector<2x8x8xbf16>
    "tpu.trace_start"() <{level = 10 : i32, message = "bqk,bkd->bqd"}> : () -> ()
    %cst_97 = arith.constant dense<0.000000e+00> : vector<2x8x16xf32>
    %265 = tpu.matmul %264, %248, %cst_97 {dimension_numbers = #tpu.dot_dimension_numbers<[2], [1], [1], [2], [0, 0, 0, 1, 1, 2], [0], [0]>} : vector<2x8x8xbf16>, vector<2x8x16xbf16>, vector<2x8x16xf32> -> vector<2x8x16xf32>
    "tpu.trace_stop"() : () -> ()
    %266 = vector.extract_strided_slice %239 {offsets = [0, 16], sizes = [16, 16], strides = [1, 1]} : vector<16x192xf32> to vector<16x16xf32>
    %267 = arith.truncf %266 : vector<16x16xf32> to vector<16x16xbf16>
    %268 = vector.shape_cast %267 : vector<16x16xbf16> to vector<2x8x16xbf16>
    %269 = vector.extract_strided_slice %239 {offsets = [0, 80], sizes = [16, 16], strides = [1, 1]} : vector<16x192xf32> to vector<16x16xf32>
    %270 = arith.truncf %269 : vector<16x16xf32> to vector<16x16xbf16>
    %271 = vector.shape_cast %270 : vector<16x16xbf16> to vector<2x8x16xbf16>
    %272 = vector.extract_strided_slice %239 {offsets = [0, 144], sizes = [16, 16], strides = [1, 1]} : vector<16x192xf32> to vector<16x16xf32>
    %273 = arith.truncf %272 : vector<16x16xf32> to vector<16x16xbf16>
    %274 = vector.shape_cast %273 : vector<16x16xbf16> to vector<2x8x16xbf16>
    "tpu.trace_start"() <{level = 10 : i32, message = "bqd,bkd->bqk"}> : () -> ()
    %cst_98 = arith.constant dense<0.000000e+00> : vector<2x8x8xf32>
    %275 = tpu.matmul %268, %271, %cst_98 {dimension_numbers = #tpu.dot_dimension_numbers<[2], [2], [1], [1], [0, 0, 0, 1, 1, 1], [0], [0]>} : vector<2x8x16xbf16>, vector<2x8x16xbf16>, vector<2x8x8xf32> -> vector<2x8x8xf32>
    "tpu.trace_stop"() : () -> ()
    %cst_99 = arith.constant 2.500000e-01 : f32
    %276 = vector.broadcast %cst_99 : f32 to vector<2x8x8xf32>
    %277 = arith.mulf %275, %276 : vector<2x8x8xf32>
    %278 = vector.broadcast %26 : vector<2x1x8xf32> to vector<2x8x8xf32>
    %279 = arith.addf %277, %278 : vector<2x8x8xf32>
    %cst_100 = arith.constant dense<0xFF800000> : vector<2x8xf32>
    %280 = vector.multi_reduction <maximumf>, %279, %cst_100 [2] : vector<2x8x8xf32> to vector<2x8xf32>
    %281 = vector.shape_cast %280 : vector<2x8xf32> to vector<2x8x1xf32>
    %282 = vector.broadcast %281 : vector<2x8x1xf32> to vector<2x8x8xf32>
    %283 = arith.subf %279, %282 : vector<2x8x8xf32>
    %284 = math.exp %283 : vector<2x8x8xf32>
    %cst_101 = arith.constant dense<0.000000e+00> : vector<2x8xf32>
    %285 = vector.multi_reduction <add>, %284, %cst_101 [2] : vector<2x8x8xf32> to vector<2x8xf32>
    %286 = vector.shape_cast %285 : vector<2x8xf32> to vector<2x8x1xf32>
    %287 = tpu.reciprocal %286 {approx = true} : vector<2x8x1xf32> -> vector<2x8x1xf32>
    %288 = vector.broadcast %287 : vector<2x8x1xf32> to vector<2x8x8xf32>
    %289 = arith.mulf %284, %288 : vector<2x8x8xf32>
    %290 = arith.truncf %289 : vector<2x8x8xf32> to vector<2x8x8xbf16>
    "tpu.trace_start"() <{level = 10 : i32, message = "bqk,bkd->bqd"}> : () -> ()
    %cst_102 = arith.constant dense<0.000000e+00> : vector<2x8x16xf32>
    %291 = tpu.matmul %290, %274, %cst_102 {dimension_numbers = #tpu.dot_dimension_numbers<[2], [1], [1], [2], [0, 0, 0, 1, 1, 2], [0], [0]>} : vector<2x8x8xbf16>, vector<2x8x16xbf16>, vector<2x8x16xf32> -> vector<2x8x16xf32>
    "tpu.trace_stop"() : () -> ()
    %292 = vector.extract_strided_slice %239 {offsets = [0, 32], sizes = [16, 16], strides = [1, 1]} : vector<16x192xf32> to vector<16x16xf32>
    %293 = arith.truncf %292 : vector<16x16xf32> to vector<16x16xbf16>
    %294 = vector.shape_cast %293 : vector<16x16xbf16> to vector<2x8x16xbf16>
    %295 = vector.extract_strided_slice %239 {offsets = [0, 96], sizes = [16, 16], strides = [1, 1]} : vector<16x192xf32> to vector<16x16xf32>
    %296 = arith.truncf %295 : vector<16x16xf32> to vector<16x16xbf16>
    %297 = vector.shape_cast %296 : vector<16x16xbf16> to vector<2x8x16xbf16>
    %298 = vector.extract_strided_slice %239 {offsets = [0, 160], sizes = [16, 16], strides = [1, 1]} : vector<16x192xf32> to vector<16x16xf32>
    %299 = arith.truncf %298 : vector<16x16xf32> to vector<16x16xbf16>
    %300 = vector.shape_cast %299 : vector<16x16xbf16> to vector<2x8x16xbf16>
    "tpu.trace_start"() <{level = 10 : i32, message = "bqd,bkd->bqk"}> : () -> ()
    %cst_103 = arith.constant dense<0.000000e+00> : vector<2x8x8xf32>
    %301 = tpu.matmul %294, %297, %cst_103 {dimension_numbers = #tpu.dot_dimension_numbers<[2], [2], [1], [1], [0, 0, 0, 1, 1, 1], [0], [0]>} : vector<2x8x16xbf16>, vector<2x8x16xbf16>, vector<2x8x8xf32> -> vector<2x8x8xf32>
    "tpu.trace_stop"() : () -> ()
    %cst_104 = arith.constant 2.500000e-01 : f32
    %302 = vector.broadcast %cst_104 : f32 to vector<2x8x8xf32>
    %303 = arith.mulf %301, %302 : vector<2x8x8xf32>
    %304 = vector.broadcast %26 : vector<2x1x8xf32> to vector<2x8x8xf32>
    %305 = arith.addf %303, %304 : vector<2x8x8xf32>
    %cst_105 = arith.constant dense<0xFF800000> : vector<2x8xf32>
    %306 = vector.multi_reduction <maximumf>, %305, %cst_105 [2] : vector<2x8x8xf32> to vector<2x8xf32>
    %307 = vector.shape_cast %306 : vector<2x8xf32> to vector<2x8x1xf32>
    %308 = vector.broadcast %307 : vector<2x8x1xf32> to vector<2x8x8xf32>
    %309 = arith.subf %305, %308 : vector<2x8x8xf32>
    %310 = math.exp %309 : vector<2x8x8xf32>
    %cst_106 = arith.constant dense<0.000000e+00> : vector<2x8xf32>
    %311 = vector.multi_reduction <add>, %310, %cst_106 [2] : vector<2x8x8xf32> to vector<2x8xf32>
    %312 = vector.shape_cast %311 : vector<2x8xf32> to vector<2x8x1xf32>
    %313 = tpu.reciprocal %312 {approx = true} : vector<2x8x1xf32> -> vector<2x8x1xf32>
    %314 = vector.broadcast %313 : vector<2x8x1xf32> to vector<2x8x8xf32>
    %315 = arith.mulf %310, %314 : vector<2x8x8xf32>
    %316 = arith.truncf %315 : vector<2x8x8xf32> to vector<2x8x8xbf16>
    "tpu.trace_start"() <{level = 10 : i32, message = "bqk,bkd->bqd"}> : () -> ()
    %cst_107 = arith.constant dense<0.000000e+00> : vector<2x8x16xf32>
    %317 = tpu.matmul %316, %300, %cst_107 {dimension_numbers = #tpu.dot_dimension_numbers<[2], [1], [1], [2], [0, 0, 0, 1, 1, 2], [0], [0]>} : vector<2x8x8xbf16>, vector<2x8x16xbf16>, vector<2x8x16xf32> -> vector<2x8x16xf32>
    "tpu.trace_stop"() : () -> ()
    %318 = vector.extract_strided_slice %239 {offsets = [0, 48], sizes = [16, 16], strides = [1, 1]} : vector<16x192xf32> to vector<16x16xf32>
    %319 = arith.truncf %318 : vector<16x16xf32> to vector<16x16xbf16>
    %320 = vector.shape_cast %319 : vector<16x16xbf16> to vector<2x8x16xbf16>
    %321 = vector.extract_strided_slice %239 {offsets = [0, 112], sizes = [16, 16], strides = [1, 1]} : vector<16x192xf32> to vector<16x16xf32>
    %322 = arith.truncf %321 : vector<16x16xf32> to vector<16x16xbf16>
    %323 = vector.shape_cast %322 : vector<16x16xbf16> to vector<2x8x16xbf16>
    %324 = vector.extract_strided_slice %239 {offsets = [0, 176], sizes = [16, 16], strides = [1, 1]} : vector<16x192xf32> to vector<16x16xf32>
    %325 = arith.truncf %324 : vector<16x16xf32> to vector<16x16xbf16>
    %326 = vector.shape_cast %325 : vector<16x16xbf16> to vector<2x8x16xbf16>
    "tpu.trace_start"() <{level = 10 : i32, message = "bqd,bkd->bqk"}> : () -> ()
    %cst_108 = arith.constant dense<0.000000e+00> : vector<2x8x8xf32>
    %327 = tpu.matmul %320, %323, %cst_108 {dimension_numbers = #tpu.dot_dimension_numbers<[2], [2], [1], [1], [0, 0, 0, 1, 1, 1], [0], [0]>} : vector<2x8x16xbf16>, vector<2x8x16xbf16>, vector<2x8x8xf32> -> vector<2x8x8xf32>
    "tpu.trace_stop"() : () -> ()
    %cst_109 = arith.constant 2.500000e-01 : f32
    %328 = vector.broadcast %cst_109 : f32 to vector<2x8x8xf32>
    %329 = arith.mulf %327, %328 : vector<2x8x8xf32>
    %330 = vector.broadcast %26 : vector<2x1x8xf32> to vector<2x8x8xf32>
    %331 = arith.addf %329, %330 : vector<2x8x8xf32>
    %cst_110 = arith.constant dense<0xFF800000> : vector<2x8xf32>
    %332 = vector.multi_reduction <maximumf>, %331, %cst_110 [2] : vector<2x8x8xf32> to vector<2x8xf32>
    %333 = vector.shape_cast %332 : vector<2x8xf32> to vector<2x8x1xf32>
    %334 = vector.broadcast %333 : vector<2x8x1xf32> to vector<2x8x8xf32>
    %335 = arith.subf %331, %334 : vector<2x8x8xf32>
    %336 = math.exp %335 : vector<2x8x8xf32>
    %cst_111 = arith.constant dense<0.000000e+00> : vector<2x8xf32>
    %337 = vector.multi_reduction <add>, %336, %cst_111 [2] : vector<2x8x8xf32> to vector<2x8xf32>
    %338 = vector.shape_cast %337 : vector<2x8xf32> to vector<2x8x1xf32>
    %339 = tpu.reciprocal %338 {approx = true} : vector<2x8x1xf32> -> vector<2x8x1xf32>
    %340 = vector.broadcast %339 : vector<2x8x1xf32> to vector<2x8x8xf32>
    %341 = arith.mulf %336, %340 : vector<2x8x8xf32>
    %342 = arith.truncf %341 : vector<2x8x8xf32> to vector<2x8x8xbf16>
    "tpu.trace_start"() <{level = 10 : i32, message = "bqk,bkd->bqd"}> : () -> ()
    %cst_112 = arith.constant dense<0.000000e+00> : vector<2x8x16xf32>
    %343 = tpu.matmul %342, %326, %cst_112 {dimension_numbers = #tpu.dot_dimension_numbers<[2], [1], [1], [2], [0, 0, 0, 1, 1, 2], [0], [0]>} : vector<2x8x8xbf16>, vector<2x8x16xbf16>, vector<2x8x16xf32> -> vector<2x8x16xf32>
    "tpu.trace_stop"() : () -> ()
    %344 = tpu.concatenate %265, %291, %317, %343 in 2 : vector<2x8x16xf32>, vector<2x8x16xf32>, vector<2x8x16xf32>, vector<2x8x16xf32> -> vector<2x8x64xf32>
    %345 = vector.shape_cast %344 : vector<2x8x64xf32> to vector<16x64xf32>
    %346 = arith.truncf %345 : vector<16x64xf32> to vector<16x64xbf16>
    %c1_113 = arith.constant 1 : index
    %c0_114 = arith.constant 0 : index
    %c0_115 = arith.constant 0 : index
    %347 = vector.load %arg6[%c1_113, %c0_114, %c0_115] : memref<2x64x64xbf16, #tpu.memory_space<vmem>>, vector<1x64x64xbf16>
    %348 = vector.shape_cast %347 : vector<1x64x64xbf16> to vector<64x64xbf16>
    %cst_116 = arith.constant dense<0.000000e+00> : vector<16x64xf32>
    %349 = tpu.matmul %346, %348, %cst_116 {dimension_numbers = #tpu.dot_dimension_numbers<[1], [0], [0], [1], [0, 0, 1, 1], [], []>} : vector<16x64xbf16>, vector<64x64xbf16>, vector<16x64xf32> -> vector<16x64xf32>
    %c1_117 = arith.constant 1 : index
    %c0_118 = arith.constant 0 : index
    %c0_119 = arith.constant 0 : index
    %350 = vector.load %arg7[%c1_117, %c0_118, %c0_119] : memref<2x1x64xf32, #tpu.memory_space<vmem>>, vector<1x1x64xf32>
    %351 = vector.shape_cast %350 : vector<1x1x64xf32> to vector<1x64xf32>
    %352 = vector.broadcast %351 : vector<1x64xf32> to vector<16x64xf32>
    %353 = arith.addf %349, %352 : vector<16x64xf32>
    %354 = arith.addf %231, %353 : vector<16x64xf32>
    %c1_120 = arith.constant 1 : index
    %c0_121 = arith.constant 0 : index
    %c0_122 = arith.constant 0 : index
    %355 = vector.load %arg8[%c1_120, %c0_121, %c0_122] : memref<2x1x64xf32, #tpu.memory_space<vmem>>, vector<1x1x64xf32>
    %356 = vector.shape_cast %355 : vector<1x1x64xf32> to vector<1x64xf32>
    %c1_123 = arith.constant 1 : index
    %c0_124 = arith.constant 0 : index
    %c0_125 = arith.constant 0 : index
    %357 = vector.load %arg9[%c1_123, %c0_124, %c0_125] : memref<2x1x64xf32, #tpu.memory_space<vmem>>, vector<1x1x64xf32>
    %358 = vector.shape_cast %357 : vector<1x1x64xf32> to vector<1x64xf32>
    %cst_126 = arith.constant dense<0.000000e+00> : vector<16xf32>
    %359 = vector.multi_reduction <add>, %354, %cst_126 [1] : vector<16x64xf32> to vector<16xf32>
    %360 = vector.shape_cast %359 : vector<16xf32> to vector<16x1xf32>
    %cst_127 = arith.constant 6.400000e+01 : f32
    %361 = vector.broadcast %cst_127 : f32 to vector<16x1xf32>
    %362 = arith.divf %360, %361 : vector<16x1xf32>
    %363 = vector.broadcast %362 : vector<16x1xf32> to vector<16x64xf32>
    %364 = arith.subf %354, %363 : vector<16x64xf32>
    %365 = arith.mulf %364, %364 : vector<16x64xf32>
    %cst_128 = arith.constant dense<0.000000e+00> : vector<16xf32>
    %366 = vector.multi_reduction <add>, %365, %cst_128 [1] : vector<16x64xf32> to vector<16xf32>
    %367 = vector.shape_cast %366 : vector<16xf32> to vector<16x1xf32>
    %cst_129 = arith.constant 6.400000e+01 : f32
    %368 = vector.broadcast %cst_129 : f32 to vector<16x1xf32>
    %369 = arith.divf %367, %368 : vector<16x1xf32>
    %370 = vector.broadcast %362 : vector<16x1xf32> to vector<16x64xf32>
    %371 = arith.subf %354, %370 : vector<16x64xf32>
    %cst_130 = arith.constant 9.99999974E-6 : f32
    %372 = vector.broadcast %cst_130 : f32 to vector<16x1xf32>
    %373 = arith.addf %369, %372 : vector<16x1xf32>
    %374 = math.rsqrt %373 : vector<16x1xf32>
    %375 = vector.broadcast %374 : vector<16x1xf32> to vector<16x64xf32>
    %376 = arith.mulf %371, %375 : vector<16x64xf32>
    %377 = vector.broadcast %356 : vector<1x64xf32> to vector<16x64xf32>
    %378 = arith.mulf %376, %377 : vector<16x64xf32>
    %379 = vector.broadcast %358 : vector<1x64xf32> to vector<16x64xf32>
    %380 = arith.addf %378, %379 : vector<16x64xf32>
    %381 = arith.truncf %380 : vector<16x64xf32> to vector<16x64xbf16>
    %c1_131 = arith.constant 1 : index
    %c0_132 = arith.constant 0 : index
    %c0_133 = arith.constant 0 : index
    %382 = vector.load %arg10[%c1_131, %c0_132, %c0_133] : memref<2x64x128xbf16, #tpu.memory_space<vmem>>, vector<1x64x128xbf16>
    %383 = vector.shape_cast %382 : vector<1x64x128xbf16> to vector<64x128xbf16>
    %cst_134 = arith.constant dense<0.000000e+00> : vector<16x128xf32>
    %384 = tpu.matmul %381, %383, %cst_134 {dimension_numbers = #tpu.dot_dimension_numbers<[1], [0], [0], [1], [0, 0, 1, 1], [], []>} : vector<16x64xbf16>, vector<64x128xbf16>, vector<16x128xf32> -> vector<16x128xf32>
    %c1_135 = arith.constant 1 : index
    %c0_136 = arith.constant 0 : index
    %c0_137 = arith.constant 0 : index
    %385 = vector.load %arg11[%c1_135, %c0_136, %c0_137] : memref<2x1x128xf32, #tpu.memory_space<vmem>>, vector<1x1x128xf32>
    %386 = vector.shape_cast %385 : vector<1x1x128xf32> to vector<1x128xf32>
    %387 = vector.broadcast %386 : vector<1x128xf32> to vector<16x128xf32>
    %388 = arith.addf %384, %387 : vector<16x128xf32>
    %389 = arith.mulf %388, %388 : vector<16x128xf32>
    %390 = arith.mulf %388, %389 : vector<16x128xf32>
    %cst_138 = arith.constant 4.471500e-02 : f32
    %391 = vector.broadcast %cst_138 : f32 to vector<16x128xf32>
    %392 = arith.mulf %391, %390 : vector<16x128xf32>
    %393 = arith.addf %388, %392 : vector<16x128xf32>
    %cst_139 = arith.constant 0.797884583 : f32
    %394 = vector.broadcast %cst_139 : f32 to vector<16x128xf32>
    %395 = arith.mulf %394, %393 : vector<16x128xf32>
    %396 = math.tanh %395 : vector<16x128xf32>
    %cst_140 = arith.constant 1.000000e+00 : f32
    %397 = vector.broadcast %cst_140 : f32 to vector<16x128xf32>
    %398 = arith.addf %397, %396 : vector<16x128xf32>
    %cst_141 = arith.constant 5.000000e-01 : f32
    %399 = vector.broadcast %cst_141 : f32 to vector<16x128xf32>
    %400 = arith.mulf %399, %398 : vector<16x128xf32>
    %401 = arith.mulf %388, %400 : vector<16x128xf32>
    %402 = arith.truncf %401 : vector<16x128xf32> to vector<16x128xbf16>
    %c1_142 = arith.constant 1 : index
    %c0_143 = arith.constant 0 : index
    %c0_144 = arith.constant 0 : index
    %403 = vector.load %arg12[%c1_142, %c0_143, %c0_144] : memref<2x128x64xbf16, #tpu.memory_space<vmem>>, vector<1x128x64xbf16>
    %404 = vector.shape_cast %403 : vector<1x128x64xbf16> to vector<128x64xbf16>
    %cst_145 = arith.constant dense<0.000000e+00> : vector<16x64xf32>
    %405 = tpu.matmul %402, %404, %cst_145 {dimension_numbers = #tpu.dot_dimension_numbers<[1], [0], [0], [1], [0, 0, 1, 1], [], []>} : vector<16x128xbf16>, vector<128x64xbf16>, vector<16x64xf32> -> vector<16x64xf32>
    %c1_146 = arith.constant 1 : index
    %c0_147 = arith.constant 0 : index
    %c0_148 = arith.constant 0 : index
    %406 = vector.load %arg13[%c1_146, %c0_147, %c0_148] : memref<2x1x64xf32, #tpu.memory_space<vmem>>, vector<1x1x64xf32>
    %407 = vector.shape_cast %406 : vector<1x1x64xf32> to vector<1x64xf32>
    %408 = vector.broadcast %407 : vector<1x64xf32> to vector<16x64xf32>
    %409 = arith.addf %405, %408 : vector<16x64xf32>
    %410 = arith.addf %380, %409 : vector<16x64xf32>
    %c1_149 = arith.constant 1 : index
    %c0_150 = arith.constant 0 : index
    %c0_151 = arith.constant 0 : index
    %411 = vector.load %arg14[%c1_149, %c0_150, %c0_151] : memref<2x1x64xf32, #tpu.memory_space<vmem>>, vector<1x1x64xf32>
    %412 = vector.shape_cast %411 : vector<1x1x64xf32> to vector<1x64xf32>
    %c1_152 = arith.constant 1 : index
    %c0_153 = arith.constant 0 : index
    %c0_154 = arith.constant 0 : index
    %413 = vector.load %arg15[%c1_152, %c0_153, %c0_154] : memref<2x1x64xf32, #tpu.memory_space<vmem>>, vector<1x1x64xf32>
    %414 = vector.shape_cast %413 : vector<1x1x64xf32> to vector<1x64xf32>
    %cst_155 = arith.constant dense<0.000000e+00> : vector<16xf32>
    %415 = vector.multi_reduction <add>, %410, %cst_155 [1] : vector<16x64xf32> to vector<16xf32>
    %416 = vector.shape_cast %415 : vector<16xf32> to vector<16x1xf32>
    %cst_156 = arith.constant 6.400000e+01 : f32
    %417 = vector.broadcast %cst_156 : f32 to vector<16x1xf32>
    %418 = arith.divf %416, %417 : vector<16x1xf32>
    %419 = vector.broadcast %418 : vector<16x1xf32> to vector<16x64xf32>
    %420 = arith.subf %410, %419 : vector<16x64xf32>
    %421 = arith.mulf %420, %420 : vector<16x64xf32>
    %cst_157 = arith.constant dense<0.000000e+00> : vector<16xf32>
    %422 = vector.multi_reduction <add>, %421, %cst_157 [1] : vector<16x64xf32> to vector<16xf32>
    %423 = vector.shape_cast %422 : vector<16xf32> to vector<16x1xf32>
    %cst_158 = arith.constant 6.400000e+01 : f32
    %424 = vector.broadcast %cst_158 : f32 to vector<16x1xf32>
    %425 = arith.divf %423, %424 : vector<16x1xf32>
    %426 = vector.broadcast %418 : vector<16x1xf32> to vector<16x64xf32>
    %427 = arith.subf %410, %426 : vector<16x64xf32>
    %cst_159 = arith.constant 9.99999974E-6 : f32
    %428 = vector.broadcast %cst_159 : f32 to vector<16x1xf32>
    %429 = arith.addf %425, %428 : vector<16x1xf32>
    %430 = math.rsqrt %429 : vector<16x1xf32>
    %431 = vector.broadcast %430 : vector<16x1xf32> to vector<16x64xf32>
    %432 = arith.mulf %427, %431 : vector<16x64xf32>
    %433 = vector.broadcast %412 : vector<1x64xf32> to vector<16x64xf32>
    %434 = arith.mulf %432, %433 : vector<16x64xf32>
    %435 = vector.broadcast %414 : vector<1x64xf32> to vector<16x64xf32>
    %436 = arith.addf %434, %435 : vector<16x64xf32>
    %437 = vector.shape_cast %436 : vector<16x64xf32> to vector<2x8x64xf32>
    %438 = vector.extract_strided_slice %437 {offsets = [0, 0, 0], sizes = [2, 1, 64], strides = [1, 1, 1]} : vector<2x8x64xf32> to vector<2x1x64xf32>
    %439 = vector.shape_cast %438 : vector<2x1x64xf32> to vector<2x64xf32>
    %440 = arith.truncf %439 : vector<2x64xf32> to vector<2x64xbf16>
    %c0_160 = arith.constant 0 : index
    %c0_161 = arith.constant 0 : index
    %441 = vector.load %arg16[%c0_160, %c0_161] : memref<64x64xbf16, #tpu.memory_space<vmem>>, vector<64x64xbf16>
    %cst_162 = arith.constant dense<0.000000e+00> : vector<2x64xf32>
    %442 = tpu.matmul %440, %441, %cst_162 {dimension_numbers = #tpu.dot_dimension_numbers<[1], [0], [0], [1], [0, 0, 1, 1], [], []>} : vector<2x64xbf16>, vector<64x64xbf16>, vector<2x64xf32> -> vector<2x64xf32>
    %c0_163 = arith.constant 0 : index
    %c0_164 = arith.constant 0 : index
    %443 = vector.load %arg17[%c0_163, %c0_164] : memref<1x64xf32, #tpu.memory_space<vmem>>, vector<1x64xf32>
    %444 = vector.broadcast %443 : vector<1x64xf32> to vector<2x64xf32>
    %445 = arith.addf %442, %444 : vector<2x64xf32>
    %446 = math.tanh %445 : vector<2x64xf32>
    %447 = arith.truncf %446 : vector<2x64xf32> to vector<2x64xbf16>
    %c0_165 = arith.constant 0 : index
    %c0_166 = arith.constant 0 : index
    %448 = vector.load %arg18[%c0_165, %c0_166] : memref<64x64xbf16, #tpu.memory_space<vmem>>, vector<64x64xbf16>
    %cst_167 = arith.constant dense<0.000000e+00> : vector<2x64xf32>
    %449 = tpu.matmul %447, %448, %cst_167 {dimension_numbers = #tpu.dot_dimension_numbers<[1], [0], [0], [1], [0, 0, 1, 1], [], []>} : vector<2x64xbf16>, vector<64x64xbf16>, vector<2x64xf32> -> vector<2x64xf32>
    %c0_168 = arith.constant 0 : index
    %c0_169 = arith.constant 0 : index
    %450 = vector.load %arg19[%c0_168, %c0_169] : memref<1x64xf32, #tpu.memory_space<vmem>>, vector<1x64xf32>
    %451 = vector.broadcast %450 : vector<1x64xf32> to vector<2x64xf32>
    %452 = arith.addf %449, %451 : vector<2x64xf32>
    %453 = math.tanh %452 : vector<2x64xf32>
    %454 = arith.truncf %453 : vector<2x64xf32> to vector<2x64xbf16>
    %c0_170 = arith.constant 0 : index
    %c0_171 = arith.constant 0 : index
    %455 = vector.load %arg20[%c0_170, %c0_171] : memref<64x128xbf16, #tpu.memory_space<vmem>>, vector<64x128xbf16>
    %cst_172 = arith.constant dense<0.000000e+00> : vector<2x128xf32>
    %456 = tpu.matmul %454, %455, %cst_172 {dimension_numbers = #tpu.dot_dimension_numbers<[1], [0], [0], [1], [0, 0, 1, 1], [], []>} : vector<2x64xbf16>, vector<64x128xbf16>, vector<2x128xf32> -> vector<2x128xf32>
    %c0_173 = arith.constant 0 : index
    %c0_174 = arith.constant 0 : index
    %457 = vector.load %arg21[%c0_173, %c0_174] : memref<1x128xf32, #tpu.memory_space<vmem>>, vector<1x128xf32>
    %458 = vector.broadcast %457 : vector<1x128xf32> to vector<2x128xf32>
    %459 = arith.addf %456, %458 : vector<2x128xf32>
    %c0_175 = arith.constant 0 : index
    %c0_176 = arith.constant 0 : index
    %460 = vector.load %arg22[%c0_175, %c0_176] : memref<2x128xf32, #tpu.memory_space<vmem>>, vector<2x128xf32>
    tpu.vector_store %arg22[%c0_175, %c0_176], %459 {strides = array<i32>} : memref<2x128xf32, #tpu.memory_space<vmem>>, vector<2x128xf32>,
    return
  }
}

</mosaic_0001>

<llo_original>
// kernel: forward.1
$region0: #{forward.1}
  #allocation0 [shape = 'u32[]', space=smem, size = 0x4, offset = 0x4, fixed_abs, tag = 'smem constant byte address 0x4 - core index']
  #allocation1 [shape = 'u32[72,128]{1,0:T(1,128)}', space=vmem, size = 0x9000, scoped, tag = 'internal scratch']
  %s0 = inlined_call_operand.vmem [shape: f32[2,8,64], index: 0, kind: input, shape index: {}]
  %s1 = inlined_call_operand.vmem [shape: f32[2,1,8], index: 1, kind: input, shape index: {}]
  %s2 = inlined_call_operand.vmem [shape: f32[1,64], index: 2, kind: input, shape index: {}]
  %s3 = inlined_call_operand.vmem [shape: f32[1,64], index: 3, kind: input, shape index: {}]
  %s4 = inlined_call_operand.vmem [shape: bf16[2,64,192], index: 4, kind: input, shape index: {}]
  %s5 = inlined_call_operand.vmem [shape: f32[2,1,192], index: 5, kind: input, shape index: {}]
  %s6 = inlined_call_operand.vmem [shape: bf16[2,64,64], index: 6, kind: input, shape index: {}]
  %s7 = inlined_call_operand.vmem [shape: f32[2,1,64], index: 7, kind: input, shape index: {}]
  %s8 = inlined_call_operand.vmem [shape: f32[2,1,64], index: 8, kind: input, shape index: {}]
  %s9 = inlined_call_operand.vmem [shape: f32[2,1,64], index: 9, kind: input, shape index: {}]
  %s10 = inlined_call_operand.vmem [shape: bf16[2,64,128], index: 10, kind: input, shape index: {}]
  %s11 = inlined_call_operand.vmem [shape: f32[2,1,128], index: 11, kind: input, shape index: {}]
  %s12 = inlined_call_operand.vmem [shape: bf16[2,128,64], index: 12, kind: input, shape index: {}]
  %s13 = inlined_call_operand.vmem [shape: f32[2,1,64], index: 13, kind: input, shape index: {}]
  %s14 = inlined_call_operand.vmem [shape: f32[2,1,64], index: 14, kind: input, shape index: {}]
  %s15 = inlined_call_operand.vmem [shape: f32[2,1,64], index: 15, kind: input, shape index: {}]
  %s16 = inlined_call_operand.vmem [shape: bf16[64,64], index: 16, kind: input, shape index: {}]
  %s17 = inlined_call_operand.vmem [shape: f32[1,64], index: 17, kind: input, shape index: {}]
  %s18 = inlined_call_operand.vmem [shape: bf16[64,64], index: 18, kind: input, shape index: {}]
  %s19 = inlined_call_operand.vmem [shape: f32[1,64], index: 19, kind: input, shape index: {}]
  %s20 = inlined_call_operand.vmem [shape: bf16[64,128], index: 20, kind: input, shape index: {}]
  %s21 = inlined_call_operand.vmem [shape: f32[1,128], index: 21, kind: input, shape index: {}]
  %s22 = inlined_call_operand.hbm [shape: f32[2,128], index: 22, kind: output, shape index: {}]
  %s23 = sld [smem:[#allocation0]]
  $region98: #{forward.1} parent=0
    _
  %s25 = ssub.s32 1, %s23
  %s26 = scalar_select 0, %s25, %s23
  $region1: #{forward.1} parent=0
    #allocation2 [shape = 'u8[1024]{0}', space=vmem, size = 0x400, scoped, tag = 'output window, operand 0, single buffered']
    #allocation3 [shape = 's32[1]{0}', space=sflag, size = 0x4, scoped, tag = 'scoped memory for forward.1']
    %27 = vsyncpa [#allocation3], 0
    // Predicated region
    $region2: #{forward.1} parent=1 // pred_check
      _
    $region3: #{forward.1} parent=1 // pred_check_branch
      %29 = sbr.rel (0) target = $region5
    $region4: #{forward.1} parent=1 // pred_region
      _
    $region5: #{forward.1} parent=1 // pred_fallthru
      _
    // Predicated region
    $region6: #{forward.1} parent=1 // pred_check
      _
    $region7: #{forward.1} parent=1 // pred_check_branch
      %31 = sbr.rel (0) target = $region9
    $region8: #{forward.1} parent=1 // pred_region
      _
    $region9: #{forward.1} parent=1 // pred_fallthru
      _
    // Predicated region
    $region10: #{forward.1} parent=1 // pred_check
      _
    $region11: #{forward.1} parent=1 // pred_check_branch
      %33 = sbr.rel (0) target = $region13
    $region12: #{forward.1} parent=1 // pred_region
      _
    $region13: #{forward.1} parent=1 // pred_fallthru
      _
    // Predicated region
    $region14: #{forward.1} parent=1 // pred_check
      _
    $region15: #{forward.1} parent=1 // pred_check_branch
      %35 = sbr.rel (0) target = $region17
    $region16: #{forward.1} parent=1 // pred_region
      _
    $region17: #{forward.1} parent=1 // pred_fallthru
      _
    // Predicated region
    $region18: #{forward.1} parent=1 // pred_check
      _
    $region19: #{forward.1} parent=1 // pred_check_branch
      %37 = sbr.rel (0) target = $region21
    $region20: #{forward.1} parent=1 // pred_region
      _
    $region21: #{forward.1} parent=1 // pred_fallthru
      _
    // Predicated region
    $region22: #{forward.1} parent=1 // pred_check
      _
    $region23: #{forward.1} parent=1 // pred_check_branch
      %39 = sbr.rel (0) target = $region25
    $region24: #{forward.1} parent=1 // pred_region
      _
    $region25: #{forward.1} parent=1 // pred_fallthru
      _
    // Predicated region
    $region26: #{forward.1} parent=1 // pred_check
      _
    $region27: #{forward.1} parent=1 // pred_check_branch
      %41 = sbr.rel (0) target = $region29
    $region28: #{forward.1} parent=1 // pred_region
      _
    $region29: #{forward.1} parent=1 // pred_fallthru
      _
    // Predicated region
    $region30: #{forward.1} parent=1 // pred_check
      _
    $region31: #{forward.1} parent=1 // pred_check_branch
      %43 = sbr.rel (0) target = $region33
    $region32: #{forward.1} parent=1 // pred_region
      _
    $region33: #{forward.1} parent=1 // pred_fallthru
      _
    // Predicated region
    $region34: #{forward.1} parent=1 // pred_check
      _
    $region35: #{forward.1} parent=1 // pred_check_branch
      %45 = sbr.rel (0) target = $region37
    $region36: #{forward.1} parent=1 // pred_region
      _
    $region37: #{forward.1} parent=1 // pred_fallthru
      _
    // Predicated region
    $region38: #{forward.1} parent=1 // pred_check
      _
    $region39: #{forward.1} parent=1 // pred_check_branch
      %47 = sbr.rel (0) target = $region41
    $region40: #{forward.1} parent=1 // pred_region
      _
    $region41: #{forward.1} parent=1 // pred_fallthru
      _
    // Predicated region
    $region42: #{forward.1} parent=1 // pred_check
      _
    $region43: #{forward.1} parent=1 // pred_check_branch
      %49 = sbr.rel (0) target = $region45
    $region44: #{forward.1} parent=1 // pred_region
      _
    $region45: #{forward.1} parent=1 // pred_fallthru
      _
    // Predicated region
    $region46: #{forward.1} parent=1 // pred_check
      _
    $region47: #{forward.1} parent=1 // pred_check_branch
      %51 = sbr.rel (0) target = $region49
    $region48: #{forward.1} parent=1 // pred_region
      _
    $region49: #{forward.1} parent=1 // pred_fallthru
      _
    // Predicated region
    $region50: #{forward.1} parent=1 // pred_check
      _
    $region51: #{forward.1} parent=1 // pred_check_branch
      %53 = sbr.rel (0) target = $region53
    $region52: #{forward.1} parent=1 // pred_region
      _
    $region53: #{forward.1} parent=1 // pred_fallthru
      _
    // Predicated region
    $region54: #{forward.1} parent=1 // pred_check
      _
    $region55: #{forward.1} parent=1 // pred_check_branch
      %55 = sbr.rel (0) target = $region57
    $region56: #{forward.1} parent=1 // pred_region
      _
    $region57: #{forward.1} parent=1 // pred_fallthru
      _
    // Predicated region
    $region58: #{forward.1} parent=1 // pred_check
      _
    $region59: #{forward.1} parent=1 // pred_check_branch
      %57 = sbr.rel (0) target = $region61
    $region60: #{forward.1} parent=1 // pred_region
      _
    $region61: #{forward.1} parent=1 // pred_fallthru
      _
    // Predicated region
    $region62: #{forward.1} parent=1 // pred_check
      _
    $region63: #{forward.1} parent=1 // pred_check_branch
      %59 = sbr.rel (0) target = $region65
    $region64: #{forward.1} parent=1 // pred_region
      _
    $region65: #{forward.1} parent=1 // pred_fallthru
      _
    // Predicated region
    $region66: #{forward.1} parent=1 // pred_check
      _
    $region67: #{forward.1} parent=1 // pred_check_branch
      %61 = sbr.rel (0) target = $region69
    $region68: #{forward.1} parent=1 // pred_region
      _
    $region69: #{forward.1} parent=1 // pred_fallthru
      _
    // Predicated region
    $region70: #{forward.1} parent=1 // pred_check
      _
    $region71: #{forward.1} parent=1 // pred_check_branch
      %63 = sbr.rel (0) target = $region73
    $region72: #{forward.1} parent=1 // pred_region
      _
    $region73: #{forward.1} parent=1 // pred_fallthru
      _
    // Predicated region
    $region74: #{forward.1} parent=1 // pred_check
      _
    $region75: #{forward.1} parent=1 // pred_check_branch
      %65 = sbr.rel (0) target = $region77
    $region76: #{forward.1} parent=1 // pred_region
      _
    $region77: #{forward.1} parent=1 // pred_fallthru
      _
    // Predicated region
    $region78: #{forward.1} parent=1 // pred_check
      _
    $region79: #{forward.1} parent=1 // pred_check_branch
      %67 = sbr.rel (0) target = $region81
    $region80: #{forward.1} parent=1 // pred_region
      _
    $region81: #{forward.1} parent=1 // pred_fallthru
      _
    // Predicated region
    $region82: #{forward.1} parent=1 // pred_check
      _
    $region83: #{forward.1} parent=1 // pred_check_branch
      %69 = sbr.rel (0) target = $region85
    $region84: #{forward.1} parent=1 // pred_region
      _
    $region85: #{forward.1} parent=1 // pred_fallthru
      _
    // Predicated region
    $region86: #{forward.1} parent=1 // pred_check
      _
    $region87: #{forward.1} parent=1 // pred_check_branch
      %71 = sbr.rel (0) target = $region89
    $region88: #{forward.1} parent=1 // pred_region
      _
    $region89: #{forward.1} parent=1 // pred_fallthru
      _
    %v73 = vld [vmem:[%s0] sm:$0xff]
    %v74 = vld [vmem:[%s0 + $0x8] sm:$0xff]
    %v75 = vld [vmem:[%s2] sm:$0x1]
    %v76 = vld [vmem:[%s3] sm:$0x1]
    %vm77 = vcmask 523264
    %v78 = vsel %vm77, %v73, 0.0
    %79 = vadd.xlane.f32.xlu0 %v78
    %v80 = vpop.xlane.xlu0 %79
    %v81 = vsel %vm77, %v74, 0.0
    %82 = vadd.xlane.f32.xlu0 %v81
    %v83 = vpop.xlane.xlu0 %82
    %v84 = vrcp.pop 64.0
    %v85 = vmul.f32 64.0, %v84
    %v86 = vsub.f32 1.0, %v85
    %v87 = vmul.f32 %v84, %v86
    %v88 = vadd.f32 %v84, %v87
    %vm89 = vweird.f32 %v84
    %v90 = vsel %vm89, %v84, %v88
    %v91 = vmul.f32 %v80, %v90
    %v92 = vmul.f32 %v83, %v90
    %v93 = vsub.f32 %v73, %v91
    %v94 = vsub.f32 %v74, %v92
    %v95 = vmul.f32 %v93, %v93
    %v96 = vmul.f32 %v94, %v94
    %v97 = vsel %vm77, %v95, 0.0
    %98 = vadd.xlane.f32.xlu0 %v97
    %v99 = vpop.xlane.xlu0 %98
    %v100 = vsel %vm77, %v96, 0.0
    %101 = vadd.xlane.f32.xlu0 %v100
    %v102 = vpop.xlane.xlu0 %101
    %v103 = vmul.f32 %v99, %v90
    %v104 = vmul.f32 %v102, %v90
    %v105 = vadd.f32 %v103, 1e-05
    %v106 = vadd.f32 %v104, 1e-05
    %v107 = vrsqrt.pop %v105
    %v108 = vmul.f32 %v107, %v105
    %v109 = vmul.f32 %v108, %v107
    %v110 = vmul.f32 0.5, %v109
    %v111 = vsub.f32 1.5, %v110
    %v112 = vmul.f32 %v107, %v111
    %vm113 = vweird.f32 %v105
    %vm114 = vweird.f32 %v107
    %vm115 = vmor %vm113, %vm114
    %v116 = vsel %vm115, %v107, %v112
    %v117 = vrsqrt.pop %v106
    %v118 = vmul.f32 %v117, %v106
    %v119 = vmul.f32 %v118, %v117
    %v120 = vmul.f32 0.5, %v119
    %v121 = vsub.f32 1.5, %v120
    %v122 = vmul.f32 %v117, %v121
    %vm123 = vweird.f32 %v106
    %vm124 = vweird.f32 %v117
    %vm125 = vmor %vm123, %vm124
    %v126 = vsel %vm125, %v117, %v122
    %v127 = vmul.f32 %v93, %v116
    %v128 = vmul.f32 %v94, %v126
    %v130 = vperm.slane %v75, 0
    %v132 = vmul.f32 %v127, %v130
    %v133 = vmul.f32 %v128, %v130
    %v135 = vperm.slane %v76, 0
    %v137 = vadd.f32 %v132, %v135
    %v138 = vadd.f32 %v133, %v135
    %v139 = vld [vmem:[%s1] sm:$0x1]
    %v140 = vld [vmem:[%s1 + $0x1] sm:$0x1]
    %v141 = vpack.c.bf16 %v138, %v137
    %v142 = vld [vmem:[%s4] sm:$0xff]
    %v143 = vld [vmem:[%s4 + $0x8] sm:$0xff]
    %v144 = vld [vmem:[%s4 + $0x10] sm:$0xff]
    %v145 = vld [vmem:[%s4 + $0x18] sm:$0xff]
    %v146 = vld [vmem:[%s4 + $0x20] sm:$0xff]
    %v147 = vld [vmem:[%s4 + $0x28] sm:$0xff]
    %v148 = vld [vmem:[%s4 + $0x30] sm:$0xff]
    %v149 = vld [vmem:[%s4 + $0x38] sm:$0xff]
    %v150 = vld [vmem:[%s5] sm:$0x3]
    %v152 = vperm.slane %v150, 0
    %v153 = vperm.slane %v150, 1
    %v164 = vunpack.c.l.b16 %v142
    %v165 = vunpack.c.h.b16 %v142
    %v166 = vunpack.c.l.b16 %v143
    %v167 = vunpack.c.h.b16 %v143
    %v168 = vunpack.c.l.b16 %v144
    %v169 = vunpack.c.h.b16 %v144
    %v170 = vunpack.c.l.b16 %v145
    %v171 = vunpack.c.h.b16 %v145
    %v172 = vunpack.c.l.b16 %v146
    %v173 = vunpack.c.h.b16 %v146
    %v174 = vunpack.c.l.b16 %v147
    %v175 = vunpack.c.h.b16 %v147
    %v176 = vunpack.c.l.b16 %v148
    %v177 = vunpack.c.h.b16 %v148
    %v178 = vunpack.c.l.b16 %v149
    %v179 = vunpack.c.h.b16 %v149
    %v180 = vpack.c.b16 %v166, %v164
    %v181 = vpack.c.b16 %v167, %v165
    %v182 = vpack.c.b16 %v170, %v168
    %v183 = vpack.c.b16 %v171, %v169
    %v184 = vpack.c.b16 %v174, %v172
    %v185 = vpack.c.b16 %v175, %v173
    %v186 = vpack.c.b16 %v178, %v176
    %v187 = vpack.c.b16 %v179, %v177
    %v197 = vsel %vm77, %v141, 0
    %199 = vmatpush.bf16.msra.mxu0 0
    %200 = vmatpush.bf16.msra.mxu0 0
    %201 = vmatpush.bf16.msra.mxu0 0
    %202 = vmatpush.bf16.msra.mxu0 0
    %203 = vmatpush.bf16.msra.mxu0 %v186
    %204 = vmatpush.bf16.msra.mxu0 %v184
    %205 = vmatpush.bf16.msra.mxu0 %v182
    %206 = vmatpush.bf16.msra.mxu0 %v180
    %207 = vmatmul.bf16.gmra.mxu0 %v197
    %v208 = vpop.f32.mrf.mxu0
    %v209 = vadd.f32 %v152, %v208
    %v210 = vpop.f32.mrf.mxu0
    %v211 = vadd.f32 %v152, %v210
    %212 = vdwg.mxu0
    %213 = vmatpush.bf16.msra.mxu0 0
    %214 = vmatpush.bf16.msra.mxu0 0
    %215 = vmatpush.bf16.msra.mxu0 0
    %216 = vmatpush.bf16.msra.mxu0 0
    %217 = vmatpush.bf16.msra.mxu0 %v187
    %218 = vmatpush.bf16.msra.mxu0 %v185
    %219 = vmatpush.bf16.msra.mxu0 %v183
    %220 = vmatpush.bf16.msra.mxu0 %v181
    %221 = vmatmul.bf16.gmra.mxu0 %v197
    %v222 = vpop.f32.mrf.mxu0
    %v223 = vadd.f32 %v153, %v222
    %v224 = vpop.f32.mrf.mxu0
    %v225 = vadd.f32 %v153, %v224
    %226 = vdwg.mxu0
    %v227 = vpack.c.bf16 %v209, %v209
    %v228 = vpack.c.bf16 %v211, %v211
    %v229 = vpack.c.bf16 %v223, %v223
    %v230 = vpack.c.bf16 %v225, %v225
    %v232 = vunpack.c.l.b16 %v227
    %v233 = vpack.c.b16 %v232, %v232
    %234 = vrot.lane.b32.xlu0 %v233, 64
    %v235 = vpop.permute.xlu0 %234
    %vm236 = vcmask 130048
    %v238 = vsel %vm236, %v227, 0
    %v241 = vsel %vm236, %v235, 0
    %243 = vmatpush.bf16.xpose.msra.mxu0 0
    %244 = vmatpush.bf16.xpose.msra.mxu0 0
    %245 = vmatpush.bf16.xpose.msra.mxu0 0
    %246 = vmatpush.bf16.xpose.msra.mxu0 0
    %247 = vmatpush.bf16.xpose.msra.mxu0 0
    %248 = vmatpush.bf16.xpose.msra.mxu0 0
    %249 = vmatpush.bf16.xpose.msra.mxu0 0
    %250 = vmatpush.bf16.xpose.msra.mxu0 %v241
    %251 = vmatmul.bf16.gmra.mxu0 %v238
    %v252 = vpop.f32.mrf.mxu0
    %v253 = vadd.f32 0.0, %v252
    %v254 = vpop.f32.mrf.mxu0
    %255 = vdwg.mxu0
    %v257 = vunpack.c.l.b16 %v228
    %v258 = vpack.c.b16 %v257, %v257
    %259 = vrot.lane.b32.xlu0 %v258, 64
    %v260 = vpop.permute.xlu0 %259
    %v262 = vsel %vm236, %v228, 0
    %v265 = vsel %vm236, %v260, 0
    %267 = vmatpush.bf16.xpose.msra.mxu0 0
    %268 = vmatpush.bf16.xpose.msra.mxu0 0
    %269 = vmatpush.bf16.xpose.msra.mxu0 0
    %270 = vmatpush.bf16.xpose.msra.mxu0 0
    %271 = vmatpush.bf16.xpose.msra.mxu0 0
    %272 = vmatpush.bf16.xpose.msra.mxu0 0
    %273 = vmatpush.bf16.xpose.msra.mxu0 0
    %274 = vmatpush.bf16.xpose.msra.mxu0 %v265
    %275 = vmatmul.bf16.gmra.mxu0 %v262
    %v276 = vpop.f32.mrf.mxu0
    %v277 = vadd.f32 0.0, %v276
    %v278 = vpop.f32.mrf.mxu0
    %279 = vdwg.mxu0
    %v280 = vmul.f32 %v253, 0.25
    %v281 = vmul.f32 %v277, 0.25
    %v284 = vperm.slane %v139, 0
    %v285 = vperm.slane %v140, 0
    %v288 = vadd.f32 %v280, %v284
    %v289 = vadd.f32 %v281, %v285
    %vm290 = vcmask 64512
    %v291 = vsel %vm290, %v288, -inf
    %292 = vmax.xlane.f32.xlu0 %v291
    %v293 = vpop.xlane.xlu0 %292
    %v294 = vsel %vm290, %v289, -inf
    %295 = vmax.xlane.f32.xlu0 %v294
    %v296 = vpop.xlane.xlu0 %295
    %v297 = vsub.f32 %v288, %v293
    %v298 = vsub.f32 %v289, %v296
    %v299 = vmul.f32 %v297, 1.442695
    %v300 = vpow.pop %v299
    %v301 = vmul.f32 %v298, 1.442695
    %v302 = vpow.pop %v301
    %v303 = vsel %vm290, %v300, 0.0
    %304 = vadd.xlane.f32.xlu0 %v303
    %v305 = vpop.xlane.xlu0 %304
    %v306 = vsel %vm290, %v302, 0.0
    %307 = vadd.xlane.f32.xlu0 %v306
    %v308 = vpop.xlane.xlu0 %307
    %v309 = vrcp.pop %v305
    %v310 = vrcp.pop %v308
    %v311 = vmul.f32 %v300, %v309
    %v312 = vmul.f32 %v302, %v310
    %v313 = vpack.c.bf16 %v311, %v311
    %v314 = vpack.c.bf16 %v312, %v312
    %v316 = vsel %vm290, %v313, 0
    %vm318 = vcmask 1043456
    %v320 = vsel %vm318, %v229, 0
    %322 = vmatpush.bf16.msra.mxu0 0
    %323 = vmatpush.bf16.msra.mxu0 0
    %324 = vmatpush.bf16.msra.mxu0 0
    %325 = vmatpush.bf16.msra.mxu0 0
    %326 = vmatpush.bf16.msra.mxu0 0
    %327 = vmatpush.bf16.msra.mxu0 0
    %328 = vmatpush.bf16.msra.mxu0 0
    %329 = vmatpush.bf16.msra.mxu0 %v320
    %330 = vmatmul.bf16.gmra.mxu0 %v316
    %v331 = vpop.f32.mrf.mxu0
    %v332 = vadd.f32 0.0, %v331
    %v333 = vpop.f32.mrf.mxu0
    %334 = vdwg.mxu0
    %v336 = vsel %vm290, %v314, 0
    %v339 = vsel %vm318, %v230, 0
    %341 = vmatpush.bf16.msra.mxu0 0
    %342 = vmatpush.bf16.msra.mxu0 0
    %343 = vmatpush.bf16.msra.mxu0 0
    %344 = vmatpush.bf16.msra.mxu0 0
    %345 = vmatpush.bf16.msra.mxu0 0
    %346 = vmatpush.bf16.msra.mxu0 0
    %347 = vmatpush.bf16.msra.mxu0 0
    %348 = vmatpush.bf16.msra.mxu0 %v339
    %349 = vmatmul.bf16.gmra.mxu0 %v336
    %v350 = vpop.f32.mrf.mxu0
    %v351 = vadd.f32 0.0, %v350
    %v352 = vpop.f32.mrf.mxu0
    %353 = vdwg.mxu0
    %354 = vrot.lane.b32.xlu0 %v233, 112
    %v355 = vpop.permute.xlu0 %354
    %356 = vrot.lane.b32.xlu0 %v233, 48
    %v357 = vpop.permute.xlu0 %356
    %v359 = vsel %vm236, %v355, 0
    %v362 = vsel %vm236, %v357, 0
    %364 = vmatpush.bf16.xpose.msra.mxu0 0
    %365 = vmatpush.bf16.xpose.msra.mxu0 0
    %366 = vmatpush.bf16.xpose.msra.mxu0 0
    %367 = vmatpush.bf16.xpose.msra.mxu0 0
    %368 = vmatpush.bf16.xpose.msra.mxu0 0
    %369 = vmatpush.bf16.xpose.msra.mxu0 0
    %370 = vmatpush.bf16.xpose.msra.mxu0 0
    %371 = vmatpush.bf16.xpose.msra.mxu0 %v362
    %372 = vmatmul.bf16.gmra.mxu0 %v359
    %v373 = vpop.f32.mrf.mxu0
    %v374 = vadd.f32 0.0, %v373
    %v375 = vpop.f32.mrf.mxu0
    %376 = vdwg.mxu0
    %377 = vrot.lane.b32.xlu0 %v258, 112
    %v378 = vpop.permute.xlu0 %377
    %379 = vrot.lane.b32.xlu0 %v258, 48
    %v380 = vpop.permute.xlu0 %379
    %v382 = vsel %vm236, %v378, 0
    %v385 = vsel %vm236, %v380, 0
    %387 = vmatpush.bf16.xpose.msra.mxu0 0
    %388 = vmatpush.bf16.xpose.msra.mxu0 0
    %389 = vmatpush.bf16.xpose.msra.mxu0 0
    %390 = vmatpush.bf16.xpose.msra.mxu0 0
    %391 = vmatpush.bf16.xpose.msra.mxu0 0
    %392 = vmatpush.bf16.xpose.msra.mxu0 0
    %393 = vmatpush.bf16.xpose.msra.mxu0 0
    %394 = vmatpush.bf16.xpose.msra.mxu0 %v385
    %395 = vmatmul.bf16.gmra.mxu0 %v382
    %v396 = vpop.f32.mrf.mxu0
    %v397 = vadd.f32 0.0, %v396
    %v398 = vpop.f32.mrf.mxu0
    %399 = vdwg.mxu0
    %v400 = vmul.f32 %v374, 0.25
    %v401 = vmul.f32 %v397, 0.25
    %v402 = vadd.f32 %v400, %v284
    %v403 = vadd.f32 %v401, %v285
    %v404 = vsel %vm290, %v402, -inf
    %405 = vmax.xlane.f32.xlu0 %v404
    %v406 = vpop.xlane.xlu0 %405
    %v407 = vsel %vm290, %v403, -inf
    %408 = vmax.xlane.f32.xlu0 %v407
    %v409 = vpop.xlane.xlu0 %408
    %v410 = vsub.f32 %v402, %v406
    %v411 = vsub.f32 %v403, %v409
    %v412 = vmul.f32 %v410, 1.442695
    %v413 = vpow.pop %v412
    %v414 = vmul.f32 %v411, 1.442695
    %v415 = vpow.pop %v414
    %v416 = vsel %vm290, %v413, 0.0
    %417 = vadd.xlane.f32.xlu0 %v416
    %v418 = vpop.xlane.xlu0 %417
    %v419 = vsel %vm290, %v415, 0.0
    %420 = vadd.xlane.f32.xlu0 %v419
    %v421 = vpop.xlane.xlu0 %420
    %v422 = vrcp.pop %v418
    %v423 = vrcp.pop %v421
    %v424 = vmul.f32 %v413, %v422
    %v425 = vmul.f32 %v415, %v423
    %v426 = vpack.c.bf16 %v424, %v424
    %v427 = vpack.c.bf16 %v425, %v425
    %v429 = vunpack.c.l.b16 %v229
    %v430 = vpack.c.b16 %v429, %v429
    %431 = vrot.lane.b32.xlu0 %v430, 112
    %v432 = vpop.permute.xlu0 %431
    %v434 = vsel %vm290, %v426, 0
    %v437 = vsel %vm318, %v432, 0
    %439 = vmatpush.bf16.msra.mxu0 0
    %440 = vmatpush.bf16.msra.mxu0 0
    %441 = vmatpush.bf16.msra.mxu0 0
    %442 = vmatpush.bf16.msra.mxu0 0
    %443 = vmatpush.bf16.msra.mxu0 0
    %444 = vmatpush.bf16.msra.mxu0 0
    %445 = vmatpush.bf16.msra.mxu0 0
    %446 = vmatpush.bf16.msra.mxu0 %v437
    %447 = vmatmul.bf16.gmra.mxu0 %v434
    %v448 = vpop.f32.mrf.mxu0
    %v449 = vadd.f32 0.0, %v448
    %v450 = vpop.f32.mrf.mxu0
    %451 = vdwg.mxu0
    %v453 = vunpack.c.l.b16 %v230
    %v454 = vpack.c.b16 %v453, %v453
    %455 = vrot.lane.b32.xlu0 %v454, 112
    %v456 = vpop.permute.xlu0 %455
    %v458 = vsel %vm290, %v427, 0
    %v461 = vsel %vm318, %v456, 0
    %463 = vmatpush.bf16.msra.mxu0 0
    %464 = vmatpush.bf16.msra.mxu0 0
    %465 = vmatpush.bf16.msra.mxu0 0
    %466 = vmatpush.bf16.msra.mxu0 0
    %467 = vmatpush.bf16.msra.mxu0 0
    %468 = vmatpush.bf16.msra.mxu0 0
    %469 = vmatpush.bf16.msra.mxu0 0
    %470 = vmatpush.bf16.msra.mxu0 %v461
    %471 = vmatmul.bf16.gmra.mxu0 %v458
    %v472 = vpop.f32.mrf.mxu0
    %v473 = vadd.f32 0.0, %v472
    %v474 = vpop.f32.mrf.mxu0
    %475 = vdwg.mxu0
    %476 = vrot.lane.b32.xlu0 %v233, 96
    %v477 = vpop.permute.xlu0 %476
    %478 = vrot.lane.b32.xlu0 %v233, 32
    %v479 = vpop.permute.xlu0 %478
    %v481 = vsel %vm236, %v477, 0
    %v484 = vsel %vm236, %v479, 0
    %486 = vmatpush.bf16.xpose.msra.mxu0 0
    %487 = vmatpush.bf16.xpose.msra.mxu0 0
    %488 = vmatpush.bf16.xpose.msra.mxu0 0
    %489 = vmatpush.bf16.xpose.msra.mxu0 0
    %490 = vmatpush.bf16.xpose.msra.mxu0 0
    %491 = vmatpush.bf16.xpose.msra.mxu0 0
    %492 = vmatpush.bf16.xpose.msra.mxu0 0
    %493 = vmatpush.bf16.xpose.msra.mxu0 %v484
    %494 = vmatmul.bf16.gmra.mxu0 %v481
    %v495 = vpop.f32.mrf.mxu0
    %v496 = vadd.f32 0.0, %v495
    %v497 = vpop.f32.mrf.mxu0
    %498 = vdwg.mxu0
    %499 = vrot.lane.b32.xlu0 %v258, 96
    %v500 = vpop.permute.xlu0 %499
    %501 = vrot.lane.b32.xlu0 %v258, 32
    %v502 = vpop.permute.xlu0 %501
    %v504 = vsel %vm236, %v500, 0
    %v507 = vsel %vm236, %v502, 0
    %509 = vmatpush.bf16.xpose.msra.mxu0 0
    %510 = vmatpush.bf16.xpose.msra.mxu0 0
    %511 = vmatpush.bf16.xpose.msra.mxu0 0
    %512 = vmatpush.bf16.xpose.msra.mxu0 0
    %513 = vmatpush.bf16.xpose.msra.mxu0 0
    %514 = vmatpush.bf16.xpose.msra.mxu0 0
    %515 = vmatpush.bf16.xpose.msra.mxu0 0
    %516 = vmatpush.bf16.xpose.msra.mxu0 %v507
    %517 = vmatmul.bf16.gmra.mxu0 %v504
    %v518 = vpop.f32.mrf.mxu0
    %v519 = vadd.f32 0.0, %v518
    %v520 = vpop.f32.mrf.mxu0
    %521 = vdwg.mxu0
    %v522 = vmul.f32 %v496, 0.25
    %v523 = vmul.f32 %v519, 0.25
    %v524 = vadd.f32 %v522, %v284
    %v525 = vadd.f32 %v523, %v285
    %v526 = vsel %vm290, %v524, -inf
    %527 = vmax.xlane.f32.xlu0 %v526
    %v528 = vpop.xlane.xlu0 %527
    %v529 = vsel %vm290, %v525, -inf
    %530 = vmax.xlane.f32.xlu0 %v529
    %v531 = vpop.xlane.xlu0 %530
    %v532 = vsub.f32 %v524, %v528
    %v533 = vsub.f32 %v525, %v531
    %v534 = vmul.f32 %v532, 1.442695
    %v535 = vpow.pop %v534
    %v536 = vmul.f32 %v533, 1.442695
    %v537 = vpow.pop %v536
    %v538 = vsel %vm290, %v535, 0.0
    %539 = vadd.xlane.f32.xlu0 %v538
    %v540 = vpop.xlane.xlu0 %539
    %v541 = vsel %vm290, %v537, 0.0
    %542 = vadd.xlane.f32.xlu0 %v541
    %v543 = vpop.xlane.xlu0 %542
    %v544 = vrcp.pop %v540
    %v545 = vrcp.pop %v543
    %v546 = vmul.f32 %v535, %v544
    %v547 = vmul.f32 %v537, %v545
    %v548 = vpack.c.bf16 %v546, %v546
    %v549 = vpack.c.bf16 %v547, %v547
    %550 = vrot.lane.b32.xlu0 %v430, 96
    %v551 = vpop.permute.xlu0 %550
    %v553 = vsel %vm290, %v548, 0
    %v556 = vsel %vm318, %v551, 0
    %558 = vmatpush.bf16.msra.mxu0 0
    %559 = vmatpush.bf16.msra.mxu0 0
    %560 = vmatpush.bf16.msra.mxu0 0
    %561 = vmatpush.bf16.msra.mxu0 0
    %562 = vmatpush.bf16.msra.mxu0 0
    %563 = vmatpush.bf16.msra.mxu0 0
    %564 = vmatpush.bf16.msra.mxu0 0
    %565 = vmatpush.bf16.msra.mxu0 %v556
    %566 = vmatmul.bf16.gmra.mxu0 %v553
    %v567 = vpop.f32.mrf.mxu0
    %v568 = vadd.f32 0.0, %v567
    %v569 = vpop.f32.mrf.mxu0
    %570 = vdwg.mxu0
    %571 = vrot.lane.b32.xlu0 %v454, 96
    %v572 = vpop.permute.xlu0 %571
    %v574 = vsel %vm290, %v549, 0
    %v577 = vsel %vm318, %v572, 0
    %579 = vmatpush.bf16.msra.mxu0 0
    %580 = vmatpush.bf16.msra.mxu0 0
    %581 = vmatpush.bf16.msra.mxu0 0
    %582 = vmatpush.bf16.msra.mxu0 0
    %583 = vmatpush.bf16.msra.mxu0 0
    %584 = vmatpush.bf16.msra.mxu0 0
    %585 = vmatpush.bf16.msra.mxu0 0
    %586 = vmatpush.bf16.msra.mxu0 %v577
    %587 = vmatmul.bf16.gmra.mxu0 %v574
    %v588 = vpop.f32.mrf.mxu0
    %v589 = vadd.f32 0.0, %v588
    %v590 = vpop.f32.mrf.mxu0
    %591 = vdwg.mxu0
    %592 = vrot.lane.b32.xlu0 %v233, 80
    %v593 = vpop.permute.xlu0 %592
    %594 = vrot.lane.b32.xlu0 %v233, 16
    %v595 = vpop.permute.xlu0 %594
    %v597 = vsel %vm236, %v593, 0
    %v600 = vsel %vm236, %v595, 0
    %602 = vmatpush.bf16.xpose.msra.mxu0 0
    %603 = vmatpush.bf16.xpose.msra.mxu0 0
    %604 = vmatpush.bf16.xpose.msra.mxu0 0
    %605 = vmatpush.bf16.xpose.msra.mxu0 0
    %606 = vmatpush.bf16.xpose.msra.mxu0 0
    %607 = vmatpush.bf16.xpose.msra.mxu0 0
    %608 = vmatpush.bf16.xpose.msra.mxu0 0
    %609 = vmatpush.bf16.xpose.msra.mxu0 %v600
    %610 = vmatmul.bf16.gmra.mxu0 %v597
    %v611 = vpop.f32.mrf.mxu0
    %v612 = vadd.f32 0.0, %v611
    %v613 = vpop.f32.mrf.mxu0
    %614 = vdwg.mxu0
    %615 = vrot.lane.b32.xlu0 %v258, 80
    %v616 = vpop.permute.xlu0 %615
    %617 = vrot.lane.b32.xlu0 %v258, 16
    %v618 = vpop.permute.xlu0 %617
    %v620 = vsel %vm236, %v616, 0
    %v623 = vsel %vm236, %v618, 0
    %625 = vmatpush.bf16.xpose.msra.mxu0 0
    %626 = vmatpush.bf16.xpose.msra.mxu0 0
    %627 = vmatpush.bf16.xpose.msra.mxu0 0
    %628 = vmatpush.bf16.xpose.msra.mxu0 0
    %629 = vmatpush.bf16.xpose.msra.mxu0 0
    %630 = vmatpush.bf16.xpose.msra.mxu0 0
    %631 = vmatpush.bf16.xpose.msra.mxu0 0
    %632 = vmatpush.bf16.xpose.msra.mxu0 %v623
    %633 = vmatmul.bf16.gmra.mxu0 %v620
    %v634 = vpop.f32.mrf.mxu0
    %v635 = vadd.f32 0.0, %v634
    %v636 = vpop.f32.mrf.mxu0
    %637 = vdwg.mxu0
    %v638 = vmul.f32 %v612, 0.25
    %v639 = vmul.f32 %v635, 0.25
    %v640 = vadd.f32 %v638, %v284
    %v641 = vadd.f32 %v639, %v285
    %v642 = vsel %vm290, %v640, -inf
    %643 = vmax.xlane.f32.xlu0 %v642
    %v644 = vpop.xlane.xlu0 %643
    %v645 = vsel %vm290, %v641, -inf
    %646 = vmax.xlane.f32.xlu0 %v645
    %v647 = vpop.xlane.xlu0 %646
    %v648 = vsub.f32 %v640, %v644
    %v649 = vsub.f32 %v641, %v647
    %v650 = vmul.f32 %v648, 1.442695
    %v651 = vpow.pop %v650
    %v652 = vmul.f32 %v649, 1.442695
    %v653 = vpow.pop %v652
    %v654 = vsel %vm290, %v651, 0.0
    %655 = vadd.xlane.f32.xlu0 %v654
    %v656 = vpop.xlane.xlu0 %655
    %v657 = vsel %vm290, %v653, 0.0
    %658 = vadd.xlane.f32.xlu0 %v657
    %v659 = vpop.xlane.xlu0 %658
    %v660 = vrcp.pop %v656
    %v661 = vrcp.pop %v659
    %v662 = vmul.f32 %v651, %v660
    %v663 = vmul.f32 %v653, %v661
    %v664 = vpack.c.bf16 %v662, %v662
    %v665 = vpack.c.bf16 %v663, %v663
    %666 = vrot.lane.b32.xlu0 %v430, 80
    %v667 = vpop.permute.xlu0 %666
    %v669 = vsel %vm290, %v664, 0
    %v672 = vsel %vm318, %v667, 0
    %674 = vmatpush.bf16.msra.mxu0 0
    %675 = vmatpush.bf16.msra.mxu0 0
    %676 = vmatpush.bf16.msra.mxu0 0
    %677 = vmatpush.bf16.msra.mxu0 0
    %678 = vmatpush.bf16.msra.mxu0 0
    %679 = vmatpush.bf16.msra.mxu0 0
    %680 = vmatpush.bf16.msra.mxu0 0
    %681 = vmatpush.bf16.msra.mxu0 %v672
    %682 = vmatmul.bf16.gmra.mxu0 %v669
    %v683 = vpop.f32.mrf.mxu0
    %v684 = vadd.f32 0.0, %v683
    %v685 = vpop.f32.mrf.mxu0
    %686 = vdwg.mxu0
    %687 = vrot.lane.b32.xlu0 %v454, 80
    %v688 = vpop.permute.xlu0 %687
    %v690 = vsel %vm290, %v665, 0
    %v693 = vsel %vm318, %v688, 0
    %695 = vmatpush.bf16.msra.mxu0 0
    %696 = vmatpush.bf16.msra.mxu0 0
    %697 = vmatpush.bf16.msra.mxu0 0
    %698 = vmatpush.bf16.msra.mxu0 0
    %699 = vmatpush.bf16.msra.mxu0 0
    %700 = vmatpush.bf16.msra.mxu0 0
    %701 = vmatpush.bf16.msra.mxu0 0
    %702 = vmatpush.bf16.msra.mxu0 %v693
    %703 = vmatmul.bf16.gmra.mxu0 %v690
    %v704 = vpop.f32.mrf.mxu0
    %v705 = vadd.f32 0.0, %v704
    %v706 = vpop.f32.mrf.mxu0
    %707 = vdwg.mxu0
    %710 = vrot.lane.b32.xlu0 %v449, 16
    %v711 = vpop.permute.xlu0 %710
    %712 = vrot.lane.b32.xlu0 %v473, 16
    %v713 = vpop.permute.xlu0 %712
    %718 = vrot.lane.b32.xlu0 %v568, 32
    %v719 = vpop.permute.xlu0 %718
    %720 = vrot.lane.b32.xlu0 %v589, 32
    %v721 = vpop.permute.xlu0 %720
    %726 = vrot.lane.b32.xlu0 %v684, 48
    %v727 = vpop.permute.xlu0 %726
    %728 = vrot.lane.b32.xlu0 %v705, 48
    %v729 = vpop.permute.xlu0 %728
    %v732 = vsel %vm236, %v332, %v711
    %v733 = vsel %vm236, %v351, %v713
    %vm734 = vcmask 261120
    %v735 = vsel %vm734, %v732, %v719
    %v736 = vsel %vm734, %v733, %v721
    %vm737 = vcmask 392192
    %v738 = vsel %vm737, %v735, %v727
    %v739 = vsel %vm737, %v736, %v729
    %v740 = vpack.c.bf16 %v739, %v738
    %v741 = vld [vmem:[%s6] sm:$0xf]
    %v742 = vld [vmem:[%s6 + $0x4] sm:$0xf]
    %v743 = vld [vmem:[%s6 + $0x8] sm:$0xf]
    %v744 = vld [vmem:[%s6 + $0xc] sm:$0xf]
    %v745 = vld [vmem:[%s6 + $0x10] sm:$0xf]
    %v746 = vld [vmem:[%s6 + $0x14] sm:$0xf]
    %v747 = vld [vmem:[%s6 + $0x18] sm:$0xf]
    %v748 = vld [vmem:[%s6 + $0x1c] sm:$0xf]
    %v749 = vld [vmem:[%s7] sm:$0x1]
    %v751 = vperm.slane %v749, 0
    %v761 = vunpack.c.l.b16 %v741
    %v762 = vunpack.c.l.b16 %v742
    %v763 = vunpack.c.l.b16 %v743
    %v764 = vunpack.c.l.b16 %v744
    %v765 = vunpack.c.l.b16 %v745
    %v766 = vunpack.c.l.b16 %v746
    %v767 = vunpack.c.l.b16 %v747
    %v768 = vunpack.c.l.b16 %v748
    %v769 = vpack.c.b16 %v762, %v761
    %v770 = vpack.c.b16 %v764, %v763
    %v771 = vpack.c.b16 %v766, %v765
    %v772 = vpack.c.b16 %v768, %v767
    %v778 = vsel %vm77, %v740, 0
    %780 = vmatpush.bf16.msra.mxu0 0
    %781 = vmatpush.bf16.msra.mxu0 0
    %782 = vmatpush.bf16.msra.mxu0 0
    %783 = vmatpush.bf16.msra.mxu0 0
    %784 = vmatpush.bf16.msra.mxu0 %v772
    %785 = vmatpush.bf16.msra.mxu0 %v771
    %786 = vmatpush.bf16.msra.mxu0 %v770
    %787 = vmatpush.bf16.msra.mxu0 %v769
    %788 = vmatmul.bf16.gmra.mxu0 %v778
    %v789 = vpop.f32.mrf.mxu0
    %v790 = vadd.f32 %v751, %v789
    %v791 = vpop.f32.mrf.mxu0
    %v792 = vadd.f32 %v751, %v791
    %793 = vdwg.mxu0
    %v794 = vadd.f32 %v137, %v790
    %v795 = vadd.f32 %v138, %v792
    %v796 = vld [vmem:[%s8] sm:$0x1]
    %v797 = vld [vmem:[%s9] sm:$0x1]
    %v798 = vsel %vm77, %v794, 0.0
    %799 = vadd.xlane.f32.xlu0 %v798
    %v800 = vpop.xlane.xlu0 %799
    %v801 = vsel %vm77, %v795, 0.0
    %802 = vadd.xlane.f32.xlu0 %v801
    %v803 = vpop.xlane.xlu0 %802
    %v804 = vmul.f32 %v800, %v90
    %v805 = vmul.f32 %v803, %v90
    %v806 = vsub.f32 %v794, %v804
    %v807 = vsub.f32 %v795, %v805
    %v808 = vmul.f32 %v806, %v806
    %v809 = vmul.f32 %v807, %v807
    %v810 = vsel %vm77, %v808, 0.0
    %811 = vadd.xlane.f32.xlu0 %v810
    %v812 = vpop.xlane.xlu0 %811
    %v813 = vsel %vm77, %v809, 0.0
    %814 = vadd.xlane.f32.xlu0 %v813
    %v815 = vpop.xlane.xlu0 %814
    %v816 = vmul.f32 %v812, %v90
    %v817 = vmul.f32 %v815, %v90
    %v818 = vadd.f32 %v816, 1e-05
    %v819 = vadd.f32 %v817, 1e-05
    %v820 = vrsqrt.pop %v818
    %v821 = vmul.f32 %v820, %v818
    %v822 = vmul.f32 %v821, %v820
    %v823 = vmul.f32 0.5, %v822
    %v824 = vsub.f32 1.5, %v823
    %v825 = vmul.f32 %v820, %v824
    %vm826 = vweird.f32 %v818
    %vm827 = vweird.f32 %v820
    %vm828 = vmor %vm826, %vm827
    %v829 = vsel %vm828, %v820, %v825
    %v830 = vrsqrt.pop %v819
    %v831 = vmul.f32 %v830, %v819
    %v832 = vmul.f32 %v831, %v830
    %v833 = vmul.f32 0.5, %v832
    %v834 = vsub.f32 1.5, %v833
    %v835 = vmul.f32 %v830, %v834
    %vm836 = vweird.f32 %v819
    %vm837 = vweird.f32 %v830
    %vm838 = vmor %vm836, %vm837
    %v839 = vsel %vm838, %v830, %v835
    %v840 = vmul.f32 %v806, %v829
    %v841 = vmul.f32 %v807, %v839
    %v843 = vperm.slane %v796, 0
    %v845 = vmul.f32 %v840, %v843
    %v846 = vmul.f32 %v841, %v843
    %v848 = vperm.slane %v797, 0
    %v850 = vadd.f32 %v845, %v848
    %v851 = vadd.f32 %v846, %v848
    %v852 = vpack.c.bf16 %v851, %v850
    %v853 = vld [vmem:[%s10] sm:$0xf]
    %v854 = vld [vmem:[%s10 + $0x4] sm:$0xf]
    %v855 = vld [vmem:[%s10 + $0x8] sm:$0xf]
    %v856 = vld [vmem:[%s10 + $0xc] sm:$0xf]
    %v857 = vld [vmem:[%s10 + $0x10] sm:$0xf]
    %v858 = vld [vmem:[%s10 + $0x14] sm:$0xf]
    %v859 = vld [vmem:[%s10 + $0x18] sm:$0xf]
    %v860 = vld [vmem:[%s10 + $0x1c] sm:$0xf]
    %v861 = vld [vmem:[%s11] sm:$0x1]
    %v863 = vperm.slane %v861, 0
    %v873 = vunpack.c.l.b16 %v853
    %v874 = vunpack.c.l.b16 %v854
    %v875 = vunpack.c.l.b16 %v855
    %v876 = vunpack.c.l.b16 %v856
    %v877 = vunpack.c.l.b16 %v857
    %v878 = vunpack.c.l.b16 %v858
    %v879 = vunpack.c.l.b16 %v859
    %v880 = vunpack.c.l.b16 %v860
    %v881 = vpack.c.b16 %v874, %v873
    %v882 = vpack.c.b16 %v876, %v875
    %v883 = vpack.c.b16 %v878, %v877
    %v884 = vpack.c.b16 %v880, %v879
    %v890 = vsel %vm77, %v852, 0
    %892 = vmatpush.bf16.msra.mxu0 0
    %893 = vmatpush.bf16.msra.mxu0 0
    %894 = vmatpush.bf16.msra.mxu0 0
    %895 = vmatpush.bf16.msra.mxu0 0
    %896 = vmatpush.bf16.msra.mxu0 %v884
    %897 = vmatpush.bf16.msra.mxu0 %v883
    %898 = vmatpush.bf16.msra.mxu0 %v882
    %899 = vmatpush.bf16.msra.mxu0 %v881
    %900 = vmatmul.bf16.gmra.mxu0 %v890
    %v901 = vpop.f32.mrf.mxu0
    %v902 = vadd.f32 %v863, %v901
    %v903 = vpop.f32.mrf.mxu0
    %v904 = vadd.f32 %v863, %v903
    %905 = vdwg.mxu0
    %v906 = vmul.f32 %v902, %v902
    %v907 = vmul.f32 %v904, %v904
    %v908 = vmul.f32 %v902, %v906
    %v909 = vmul.f32 %v904, %v907
    %v910 = vmul.f32 %v908, 0.044715
    %v911 = vmul.f32 %v909, 0.044715
    %v912 = vadd.f32 %v902, %v910
    %v913 = vadd.f32 %v904, %v911
    %v914 = vmul.f32 %v912, 0.7978846
    %v915 = vmul.f32 %v913, 0.7978846
    %v916 = vtanh.pop %v914
    %v917 = vtanh.pop %v915
    %v918 = vadd.f32 %v916, 1.0
    %v919 = vadd.f32 %v917, 1.0
    %v920 = vmul.f32 %v918, 0.5
    %v921 = vmul.f32 %v919, 0.5
    %v922 = vmul.f32 %v902, %v920
    %v923 = vmul.f32 %v904, %v921
    %v924 = vpack.c.bf16 %v923, %v922
    %v925 = vld [vmem:[%s12] sm:$0xf]
    %v926 = vld [vmem:[%s12 + $0x4] sm:$0xf]
    %v927 = vld [vmem:[%s12 + $0x8] sm:$0xf]
    %v928 = vld [vmem:[%s12 + $0xc] sm:$0xf]
    %v929 = vld [vmem:[%s12 + $0x10] sm:$0xf]
    %v930 = vld [vmem:[%s12 + $0x14] sm:$0xf]
    %v931 = vld [vmem:[%s12 + $0x18] sm:$0xf]
    %v932 = vld [vmem:[%s12 + $0x1c] sm:$0xf]
    %v933 = vld [vmem:[%s12 + $0x20] sm:$0xf]
    %v934 = vld [vmem:[%s12 + $0x24] sm:$0xf]
    %v935 = vld [vmem:[%s12 + $0x28] sm:$0xf]
    %v936 = vld [vmem:[%s12 + $0x2c] sm:$0xf]
    %v937 = vld [vmem:[%s12 + $0x30] sm:$0xf]
    %v938 = vld [vmem:[%s12 + $0x34] sm:$0xf]
    %v939 = vld [vmem:[%s12 + $0x38] sm:$0xf]
    %v940 = vld [vmem:[%s12 + $0x3c] sm:$0xf]
    %v941 = vld [vmem:[%s13] sm:$0x1]
    %v943 = vperm.slane %v941, 0
    %v961 = vunpack.c.l.b16 %v925
    %v962 = vunpack.c.l.b16 %v926
    %v963 = vunpack.c.l.b16 %v927
    %v964 = vunpack.c.l.b16 %v928
    %v965 = vunpack.c.l.b16 %v929
    %v966 = vunpack.c.l.b16 %v930
    %v967 = vunpack.c.l.b16 %v931
    %v968 = vunpack.c.l.b16 %v932
    %v969 = vunpack.c.l.b16 %v933
    %v970 = vunpack.c.l.b16 %v934
    %v971 = vunpack.c.l.b16 %v935
    %v972 = vunpack.c.l.b16 %v936
    %v973 = vunpack.c.l.b16 %v937
    %v974 = vunpack.c.l.b16 %v938
    %v975 = vunpack.c.l.b16 %v939
    %v976 = vunpack.c.l.b16 %v940
    %v977 = vpack.c.b16 %v962, %v961
    %v978 = vpack.c.b16 %v964, %v963
    %v979 = vpack.c.b16 %v966, %v965
    %v980 = vpack.c.b16 %v968, %v967
    %v981 = vpack.c.b16 %v970, %v969
    %v982 = vpack.c.b16 %v972, %v971
    %v983 = vpack.c.b16 %v974, %v973
    %v984 = vpack.c.b16 %v976, %v975
    %993 = vmatpush.bf16.msra.mxu0 %v984
    %994 = vmatpush.bf16.msra.mxu0 %v983
    %995 = vmatpush.bf16.msra.mxu0 %v982
    %996 = vmatpush.bf16.msra.mxu0 %v981
    %997 = vmatpush.bf16.msra.mxu0 %v980
    %998 = vmatpush.bf16.msra.mxu0 %v979
    %999 = vmatpush.bf16.msra.mxu0 %v978
    %1000 = vmatpush.bf16.msra.mxu0 %v977
    %1001 = vmatmul.bf16.gmra.mxu0 %v924
    %v1002 = vpop.f32.mrf.mxu0
    %v1003 = vadd.f32 %v943, %v1002
    %v1004 = vpop.f32.mrf.mxu0
    %v1005 = vadd.f32 %v943, %v1004
    %1006 = vdwg.mxu0
    %v1007 = vadd.f32 %v850, %v1003
    %v1008 = vadd.f32 %v851, %v1005
    %v1009 = vld [vmem:[%s14] sm:$0x1]
    %v1010 = vld [vmem:[%s15] sm:$0x1]
    %v1011 = vsel %vm77, %v1007, 0.0
    %1012 = vadd.xlane.f32.xlu0 %v1011
    %v1013 = vpop.xlane.xlu0 %1012
    %v1014 = vsel %vm77, %v1008, 0.0
    %1015 = vadd.xlane.f32.xlu0 %v1014
    %v1016 = vpop.xlane.xlu0 %1015
    %v1017 = vmul.f32 %v1013, %v90
    %v1018 = vmul.f32 %v1016, %v90
    %v1019 = vsub.f32 %v1007, %v1017
    %v1020 = vsub.f32 %v1008, %v1018
    %v1021 = vmul.f32 %v1019, %v1019
    %v1022 = vmul.f32 %v1020, %v1020
    %v1023 = vsel %vm77, %v1021, 0.0
    %1024 = vadd.xlane.f32.xlu0 %v1023
    %v1025 = vpop.xlane.xlu0 %1024
    %v1026 = vsel %vm77, %v1022, 0.0
    %1027 = vadd.xlane.f32.xlu0 %v1026
    %v1028 = vpop.xlane.xlu0 %1027
    %v1029 = vmul.f32 %v1025, %v90
    %v1030 = vmul.f32 %v1028, %v90
    %v1031 = vadd.f32 %v1029, 1e-05
    %v1032 = vadd.f32 %v1030, 1e-05
    %v1033 = vrsqrt.pop %v1031
    %v1034 = vmul.f32 %v1033, %v1031
    %v1035 = vmul.f32 %v1034, %v1033
    %v1036 = vmul.f32 0.5, %v1035
    %v1037 = vsub.f32 1.5, %v1036
    %v1038 = vmul.f32 %v1033, %v1037
    %vm1039 = vweird.f32 %v1031
    %vm1040 = vweird.f32 %v1033
    %vm1041 = vmor %vm1039, %vm1040
    %v1042 = vsel %vm1041, %v1033, %v1038
    %v1043 = vrsqrt.pop %v1032
    %v1044 = vmul.f32 %v1043, %v1032
    %v1045 = vmul.f32 %v1044, %v1043
    %v1046 = vmul.f32 0.5, %v1045
    %v1047 = vsub.f32 1.5, %v1046
    %v1048 = vmul.f32 %v1043, %v1047
    %vm1049 = vweird.f32 %v1032
    %vm1050 = vweird.f32 %v1043
    %vm1051 = vmor %vm1049, %vm1050
    %v1052 = vsel %vm1051, %v1043, %v1048
    %v1053 = vmul.f32 %v1019, %v1042
    %v1054 = vmul.f32 %v1020, %v1052
    %v1056 = vperm.slane %v1009, 0
    %v1058 = vmul.f32 %v1053, %v1056
    %v1059 = vmul.f32 %v1054, %v1056
    %v1061 = vperm.slane %v1010, 0
    %v1063 = vadd.f32 %v1058, %v1061
    %v1064 = vadd.f32 %v1059, %v1061
    %v1065 = vpack.c.bf16 %v1064, %v1063
    %s1066 = scalar_lea.vmem %s4, 64
    %v1067 = vld [vmem:[%s1066] sm:$0xff]
    %v1068 = vld [vmem:[%s1066 + $0x8] sm:$0xff]
    %v1069 = vld [vmem:[%s1066 + $0x10] sm:$0xff]
    %v1070 = vld [vmem:[%s1066 + $0x18] sm:$0xff]
    %v1071 = vld [vmem:[%s1066 + $0x20] sm:$0xff]
    %v1072 = vld [vmem:[%s1066 + $0x28] sm:$0xff]
    %v1073 = vld [vmem:[%s1066 + $0x30] sm:$0xff]
    %v1074 = vld [vmem:[%s1066 + $0x38] sm:$0xff]
    %s1075 = scalar_lea.vmem %s5, 2
    %v1076 = vld [vmem:[%s1075] sm:$0x3]
    %v1078 = vperm.slane %v1076, 0
    %v1079 = vperm.slane %v1076, 1
    %v1090 = vunpack.c.l.b16 %v1067
    %v1091 = vunpack.c.h.b16 %v1067
    %v1092 = vunpack.c.l.b16 %v1068
    %v1093 = vunpack.c.h.b16 %v1068
    %v1094 = vunpack.c.l.b16 %v1069
    %v1095 = vunpack.c.h.b16 %v1069
    %v1096 = vunpack.c.l.b16 %v1070
    %v1097 = vunpack.c.h.b16 %v1070
    %v1098 = vunpack.c.l.b16 %v1071
    %v1099 = vunpack.c.h.b16 %v1071
    %v1100 = vunpack.c.l.b16 %v1072
    %v1101 = vunpack.c.h.b16 %v1072
    %v1102 = vunpack.c.l.b16 %v1073
    %v1103 = vunpack.c.h.b16 %v1073
    %v1104 = vunpack.c.l.b16 %v1074
    %v1105 = vunpack.c.h.b16 %v1074
    %v1106 = vpack.c.b16 %v1092, %v1090
    %v1107 = vpack.c.b16 %v1093, %v1091
    %v1108 = vpack.c.b16 %v1096, %v1094
    %v1109 = vpack.c.b16 %v1097, %v1095
    %v1110 = vpack.c.b16 %v1100, %v1098
    %v1111 = vpack.c.b16 %v1101, %v1099
    %v1112 = vpack.c.b16 %v1104, %v1102
    %v1113 = vpack.c.b16 %v1105, %v1103
    %v1123 = vsel %vm77, %v1065, 0
    %1125 = vmatpush.bf16.msra.mxu0 0
    %1126 = vmatpush.bf16.msra.mxu0 0
    %1127 = vmatpush.bf16.msra.mxu0 0
    %1128 = vmatpush.bf16.msra.mxu0 0
    %1129 = vmatpush.bf16.msra.mxu0 %v1112
    %1130 = vmatpush.bf16.msra.mxu0 %v1110
    %1131 = vmatpush.bf16.msra.mxu0 %v1108
    %1132 = vmatpush.bf16.msra.mxu0 %v1106
    %1133 = vmatmul.bf16.gmra.mxu0 %v1123
    %v1134 = vpop.f32.mrf.mxu0
    %v1135 = vadd.f32 %v1078, %v1134
    %v1136 = vpop.f32.mrf.mxu0
    %v1137 = vadd.f32 %v1078, %v1136
    %1138 = vdwg.mxu0
    %1139 = vmatpush.bf16.msra.mxu0 0
    %1140 = vmatpush.bf16.msra.mxu0 0
    %1141 = vmatpush.bf16.msra.mxu0 0
    %1142 = vmatpush.bf16.msra.mxu0 0
    %1143 = vmatpush.bf16.msra.mxu0 %v1113
    %1144 = vmatpush.bf16.msra.mxu0 %v1111
    %1145 = vmatpush.bf16.msra.mxu0 %v1109
    %1146 = vmatpush.bf16.msra.mxu0 %v1107
    %1147 = vmatmul.bf16.gmra.mxu0 %v1123
    %v1148 = vpop.f32.mrf.mxu0
    %v1149 = vadd.f32 %v1079, %v1148
    %v1150 = vpop.f32.mrf.mxu0
    %v1151 = vadd.f32 %v1079, %v1150
    %1152 = vdwg.mxu0
    %v1153 = vpack.c.bf16 %v1135, %v1135
    %v1154 = vpack.c.bf16 %v1137, %v1137
    %v1155 = vpack.c.bf16 %v1149, %v1149
    %v1156 = vpack.c.bf16 %v1151, %v1151
    %v1158 = vunpack.c.l.b16 %v1153
    %v1159 = vpack.c.b16 %v1158, %v1158
    %1160 = vrot.lane.b32.xlu0 %v1159, 64
    %v1161 = vpop.permute.xlu0 %1160
    %v1163 = vsel %vm236, %v1153, 0
    %v1166 = vsel %vm236, %v1161, 0
    %1168 = vmatpush.bf16.xpose.msra.mxu0 0
    %1169 = vmatpush.bf16.xpose.msra.mxu0 0
    %1170 = vmatpush.bf16.xpose.msra.mxu0 0
    %1171 = vmatpush.bf16.xpose.msra.mxu0 0
    %1172 = vmatpush.bf16.xpose.msra.mxu0 0
    %1173 = vmatpush.bf16.xpose.msra.mxu0 0
    %1174 = vmatpush.bf16.xpose.msra.mxu0 0
    %1175 = vmatpush.bf16.xpose.msra.mxu0 %v1166
    %1176 = vmatmul.bf16.gmra.mxu0 %v1163
    %v1177 = vpop.f32.mrf.mxu0
    %v1178 = vadd.f32 0.0, %v1177
    %v1179 = vpop.f32.mrf.mxu0
    %1180 = vdwg.mxu0
    %v1182 = vunpack.c.l.b16 %v1154
    %v1183 = vpack.c.b16 %v1182, %v1182
    %1184 = vrot.lane.b32.xlu0 %v1183, 64
    %v1185 = vpop.permute.xlu0 %1184
    %v1187 = vsel %vm236, %v1154, 0
    %v1190 = vsel %vm236, %v1185, 0
    %1192 = vmatpush.bf16.xpose.msra.mxu0 0
    %1193 = vmatpush.bf16.xpose.msra.mxu0 0
    %1194 = vmatpush.bf16.xpose.msra.mxu0 0
    %1195 = vmatpush.bf16.xpose.msra.mxu0 0
    %1196 = vmatpush.bf16.xpose.msra.mxu0 0
    %1197 = vmatpush.bf16.xpose.msra.mxu0 0
    %1198 = vmatpush.bf16.xpose.msra.mxu0 0
    %1199 = vmatpush.bf16.xpose.msra.mxu0 %v1190
    %1200 = vmatmul.bf16.gmra.mxu0 %v1187
    %v1201 = vpop.f32.mrf.mxu0
    %v1202 = vadd.f32 0.0, %v1201
    %v1203 = vpop.f32.mrf.mxu0
    %1204 = vdwg.mxu0
    %v1205 = vmul.f32 %v1178, 0.25
    %v1206 = vmul.f32 %v1202, 0.25
    %v1207 = vadd.f32 %v1205, %v284
    %v1208 = vadd.f32 %v1206, %v285
    %v1209 = vsel %vm290, %v1207, -inf
    %1210 = vmax.xlane.f32.xlu0 %v1209
    %v1211 = vpop.xlane.xlu0 %1210
    %v1212 = vsel %vm290, %v1208, -inf
    %1213 = vmax.xlane.f32.xlu0 %v1212
    %v1214 = vpop.xlane.xlu0 %1213
    %v1215 = vsub.f32 %v1207, %v1211
    %v1216 = vsub.f32 %v1208, %v1214
    %v1217 = vmul.f32 %v1215, 1.442695
    %v1218 = vpow.pop %v1217
    %v1219 = vmul.f32 %v1216, 1.442695
    %v1220 = vpow.pop %v1219
    %v1221 = vsel %vm290, %v1218, 0.0
    %1222 = vadd.xlane.f32.xlu0 %v1221
    %v1223 = vpop.xlane.xlu0 %1222
    %v1224 = vsel %vm290, %v1220, 0.0
    %1225 = vadd.xlane.f32.xlu0 %v1224
    %v1226 = vpop.xlane.xlu0 %1225
    %v1227 = vrcp.pop %v1223
    %v1228 = vrcp.pop %v1226
    %v1229 = vmul.f32 %v1218, %v1227
    %v1230 = vmul.f32 %v1220, %v1228
    %v1231 = vpack.c.bf16 %v1229, %v1229
    %v1232 = vpack.c.bf16 %v1230, %v1230
    %v1234 = vsel %vm290, %v1231, 0
    %v1237 = vsel %vm318, %v1155, 0
    %1239 = vmatpush.bf16.msra.mxu0 0
    %1240 = vmatpush.bf16.msra.mxu0 0
    %1241 = vmatpush.bf16.msra.mxu0 0
    %1242 = vmatpush.bf16.msra.mxu0 0
    %1243 = vmatpush.bf16.msra.mxu0 0
    %1244 = vmatpush.bf16.msra.mxu0 0
    %1245 = vmatpush.bf16.msra.mxu0 0
    %1246 = vmatpush.bf16.msra.mxu0 %v1237
    %1247 = vmatmul.bf16.gmra.mxu0 %v1234
    %v1248 = vpop.f32.mrf.mxu0
    %v1249 = vadd.f32 0.0, %v1248
    %v1250 = vpop.f32.mrf.mxu0
    %1251 = vdwg.mxu0
    %v1253 = vsel %vm290, %v1232, 0
    %v1256 = vsel %vm318, %v1156, 0
    %1258 = vmatpush.bf16.msra.mxu0 0
    %1259 = vmatpush.bf16.msra.mxu0 0
    %1260 = vmatpush.bf16.msra.mxu0 0
    %1261 = vmatpush.bf16.msra.mxu0 0
    %1262 = vmatpush.bf16.msra.mxu0 0
    %1263 = vmatpush.bf16.msra.mxu0 0
    %1264 = vmatpush.bf16.msra.mxu0 0
    %1265 = vmatpush.bf16.msra.mxu0 %v1256
    %1266 = vmatmul.bf16.gmra.mxu0 %v1253
    %v1267 = vpop.f32.mrf.mxu0
    %v1268 = vadd.f32 0.0, %v1267
    %v1269 = vpop.f32.mrf.mxu0
    %1270 = vdwg.mxu0
    %1271 = vrot.lane.b32.xlu0 %v1159, 112
    %v1272 = vpop.permute.xlu0 %1271
    %1273 = vrot.lane.b32.xlu0 %v1159, 48
    %v1274 = vpop.permute.xlu0 %1273
    %v1276 = vsel %vm236, %v1272, 0
    %v1279 = vsel %vm236, %v1274, 0
    %1281 = vmatpush.bf16.xpose.msra.mxu0 0
    %1282 = vmatpush.bf16.xpose.msra.mxu0 0
    %1283 = vmatpush.bf16.xpose.msra.mxu0 0
    %1284 = vmatpush.bf16.xpose.msra.mxu0 0
    %1285 = vmatpush.bf16.xpose.msra.mxu0 0
    %1286 = vmatpush.bf16.xpose.msra.mxu0 0
    %1287 = vmatpush.bf16.xpose.msra.mxu0 0
    %1288 = vmatpush.bf16.xpose.msra.mxu0 %v1279
    %1289 = vmatmul.bf16.gmra.mxu0 %v1276
    %v1290 = vpop.f32.mrf.mxu0
    %v1291 = vadd.f32 0.0, %v1290
    %v1292 = vpop.f32.mrf.mxu0
    %1293 = vdwg.mxu0
    %1294 = vrot.lane.b32.xlu0 %v1183, 112
    %v1295 = vpop.permute.xlu0 %1294
    %1296 = vrot.lane.b32.xlu0 %v1183, 48
    %v1297 = vpop.permute.xlu0 %1296
    %v1299 = vsel %vm236, %v1295, 0
    %v1302 = vsel %vm236, %v1297, 0
    %1304 = vmatpush.bf16.xpose.msra.mxu0 0
    %1305 = vmatpush.bf16.xpose.msra.mxu0 0
    %1306 = vmatpush.bf16.xpose.msra.mxu0 0
    %1307 = vmatpush.bf16.xpose.msra.mxu0 0
    %1308 = vmatpush.bf16.xpose.msra.mxu0 0
    %1309 = vmatpush.bf16.xpose.msra.mxu0 0
    %1310 = vmatpush.bf16.xpose.msra.mxu0 0
    %1311 = vmatpush.bf16.xpose.msra.mxu0 %v1302
    %1312 = vmatmul.bf16.gmra.mxu0 %v1299
    %v1313 = vpop.f32.mrf.mxu0
    %v1314 = vadd.f32 0.0, %v1313
    %v1315 = vpop.f32.mrf.mxu0
    %1316 = vdwg.mxu0
    %v1317 = vmul.f32 %v1291, 0.25
    %v1318 = vmul.f32 %v1314, 0.25
    %v1319 = vadd.f32 %v1317, %v284
    %v1320 = vadd.f32 %v1318, %v285
    %v1321 = vsel %vm290, %v1319, -inf
    %1322 = vmax.xlane.f32.xlu0 %v1321
    %v1323 = vpop.xlane.xlu0 %1322
    %v1324 = vsel %vm290, %v1320, -inf
    %1325 = vmax.xlane.f32.xlu0 %v1324
    %v1326 = vpop.xlane.xlu0 %1325
    %v1327 = vsub.f32 %v1319, %v1323
    %v1328 = vsub.f32 %v1320, %v1326
    %v1329 = vmul.f32 %v1327, 1.442695
    %v1330 = vpow.pop %v1329
    %v1331 = vmul.f32 %v1328, 1.442695
    %v1332 = vpow.pop %v1331
    %v1333 = vsel %vm290, %v1330, 0.0
    %1334 = vadd.xlane.f32.xlu0 %v1333
    %v1335 = vpop.xlane.xlu0 %1334
    %v1336 = vsel %vm290, %v1332, 0.0
    %1337 = vadd.xlane.f32.xlu0 %v1336
    %v1338 = vpop.xlane.xlu0 %1337
    %v1339 = vrcp.pop %v1335
    %v1340 = vrcp.pop %v1338
    %v1341 = vmul.f32 %v1330, %v1339
    %v1342 = vmul.f32 %v1332, %v1340
    %v1343 = vpack.c.bf16 %v1341, %v1341
    %v1344 = vpack.c.bf16 %v1342, %v1342
    %v1346 = vunpack.c.l.b16 %v1155
    %v1347 = vpack.c.b16 %v1346, %v1346
    %1348 = vrot.lane.b32.xlu0 %v1347, 112
    %v1349 = vpop.permute.xlu0 %1348
    %v1351 = vsel %vm290, %v1343, 0
    %v1354 = vsel %vm318, %v1349, 0
    %1356 = vmatpush.bf16.msra.mxu0 0
    %1357 = vmatpush.bf16.msra.mxu0 0
    %1358 = vmatpush.bf16.msra.mxu0 0
    %1359 = vmatpush.bf16.msra.mxu0 0
    %1360 = vmatpush.bf16.msra.mxu0 0
    %1361 = vmatpush.bf16.msra.mxu0 0
    %1362 = vmatpush.bf16.msra.mxu0 0
    %1363 = vmatpush.bf16.msra.mxu0 %v1354
    %1364 = vmatmul.bf16.gmra.mxu0 %v1351
    %v1365 = vpop.f32.mrf.mxu0
    %v1366 = vadd.f32 0.0, %v1365
    %v1367 = vpop.f32.mrf.mxu0
    %1368 = vdwg.mxu0
    %v1370 = vunpack.c.l.b16 %v1156
    %v1371 = vpack.c.b16 %v1370, %v1370
    %1372 = vrot.lane.b32.xlu0 %v1371, 112
    %v1373 = vpop.permute.xlu0 %1372
    %v1375 = vsel %vm290, %v1344, 0
    %v1378 = vsel %vm318, %v1373, 0
    %1380 = vmatpush.bf16.msra.mxu0 0
    %1381 = vmatpush.bf16.msra.mxu0 0
    %1382 = vmatpush.bf16.msra.mxu0 0
    %1383 = vmatpush.bf16.msra.mxu0 0
    %1384 = vmatpush.bf16.msra.mxu0 0
    %1385 = vmatpush.bf16.msra.mxu0 0
    %1386 = vmatpush.bf16.msra.mxu0 0
    %1387 = vmatpush.bf16.msra.mxu0 %v1378
    %1388 = vmatmul.bf16.gmra.mxu0 %v1375
    %v1389 = vpop.f32.mrf.mxu0
    %v1390 = vadd.f32 0.0, %v1389
    %v1391 = vpop.f32.mrf.mxu0
    %1392 = vdwg.mxu0
    %1393 = vrot.lane.b32.xlu0 %v1159, 96
    %v1394 = vpop.permute.xlu0 %1393
    %1395 = vrot.lane.b32.xlu0 %v1159, 32
    %v1396 = vpop.permute.xlu0 %1395
    %v1398 = vsel %vm236, %v1394, 0
    %v1401 = vsel %vm236, %v1396, 0
    %1403 = vmatpush.bf16.xpose.msra.mxu0 0
    %1404 = vmatpush.bf16.xpose.msra.mxu0 0
    %1405 = vmatpush.bf16.xpose.msra.mxu0 0
    %1406 = vmatpush.bf16.xpose.msra.mxu0 0
    %1407 = vmatpush.bf16.xpose.msra.mxu0 0
    %1408 = vmatpush.bf16.xpose.msra.mxu0 0
    %1409 = vmatpush.bf16.xpose.msra.mxu0 0
    %1410 = vmatpush.bf16.xpose.msra.mxu0 %v1401
    %1411 = vmatmul.bf16.gmra.mxu0 %v1398
    %v1412 = vpop.f32.mrf.mxu0
    %v1413 = vadd.f32 0.0, %v1412
    %v1414 = vpop.f32.mrf.mxu0
    %1415 = vdwg.mxu0
    %1416 = vrot.lane.b32.xlu0 %v1183, 96
    %v1417 = vpop.permute.xlu0 %1416
    %1418 = vrot.lane.b32.xlu0 %v1183, 32
    %v1419 = vpop.permute.xlu0 %1418
    %v1421 = vsel %vm236, %v1417, 0
    %v1424 = vsel %vm236, %v1419, 0
    %1426 = vmatpush.bf16.xpose.msra.mxu0 0
    %1427 = vmatpush.bf16.xpose.msra.mxu0 0
    %1428 = vmatpush.bf16.xpose.msra.mxu0 0
    %1429 = vmatpush.bf16.xpose.msra.mxu0 0
    %1430 = vmatpush.bf16.xpose.msra.mxu0 0
    %1431 = vmatpush.bf16.xpose.msra.mxu0 0
    %1432 = vmatpush.bf16.xpose.msra.mxu0 0
    %1433 = vmatpush.bf16.xpose.msra.mxu0 %v1424
    %1434 = vmatmul.bf16.gmra.mxu0 %v1421
    %v1435 = vpop.f32.mrf.mxu0
    %v1436 = vadd.f32 0.0, %v1435
    %v1437 = vpop.f32.mrf.mxu0
    %1438 = vdwg.mxu0
    %v1439 = vmul.f32 %v1413, 0.25
    %v1440 = vmul.f32 %v1436, 0.25
    %v1441 = vadd.f32 %v1439, %v284
    %v1442 = vadd.f32 %v1440, %v285
    %v1443 = vsel %vm290, %v1441, -inf
    %1444 = vmax.xlane.f32.xlu0 %v1443
    %v1445 = vpop.xlane.xlu0 %1444
    %v1446 = vsel %vm290, %v1442, -inf
    %1447 = vmax.xlane.f32.xlu0 %v1446
    %v1448 = vpop.xlane.xlu0 %1447
    %v1449 = vsub.f32 %v1441, %v1445
    %v1450 = vsub.f32 %v1442, %v1448
    %v1451 = vmul.f32 %v1449, 1.442695
    %v1452 = vpow.pop %v1451
    %v1453 = vmul.f32 %v1450, 1.442695
    %v1454 = vpow.pop %v1453
    %v1455 = vsel %vm290, %v1452, 0.0
    %1456 = vadd.xlane.f32.xlu0 %v1455
    %v1457 = vpop.xlane.xlu0 %1456
    %v1458 = vsel %vm290, %v1454, 0.0
    %1459 = vadd.xlane.f32.xlu0 %v1458
    %v1460 = vpop.xlane.xlu0 %1459
    %v1461 = vrcp.pop %v1457
    %v1462 = vrcp.pop %v1460
    %v1463 = vmul.f32 %v1452, %v1461
    %v1464 = vmul.f32 %v1454, %v1462
    %v1465 = vpack.c.bf16 %v1463, %v1463
    %v1466 = vpack.c.bf16 %v1464, %v1464
    %1467 = vrot.lane.b32.xlu0 %v1347, 96
    %v1468 = vpop.permute.xlu0 %1467
    %v1470 = vsel %vm290, %v1465, 0
    %v1473 = vsel %vm318, %v1468, 0
    %1475 = vmatpush.bf16.msra.mxu0 0
    %1476 = vmatpush.bf16.msra.mxu0 0
    %1477 = vmatpush.bf16.msra.mxu0 0
    %1478 = vmatpush.bf16.msra.mxu0 0
    %1479 = vmatpush.bf16.msra.mxu0 0
    %1480 = vmatpush.bf16.msra.mxu0 0
    %1481 = vmatpush.bf16.msra.mxu0 0
    %1482 = vmatpush.bf16.msra.mxu0 %v1473
    %1483 = vmatmul.bf16.gmra.mxu0 %v1470
    %v1484 = vpop.f32.mrf.mxu0
    %v1485 = vadd.f32 0.0, %v1484
    %v1486 = vpop.f32.mrf.mxu0
    %1487 = vdwg.mxu0
    %1488 = vrot.lane.b32.xlu0 %v1371, 96
    %v1489 = vpop.permute.xlu0 %1488
    %v1491 = vsel %vm290, %v1466, 0
    %v1494 = vsel %vm318, %v1489, 0
    %1496 = vmatpush.bf16.msra.mxu0 0
    %1497 = vmatpush.bf16.msra.mxu0 0
    %1498 = vmatpush.bf16.msra.mxu0 0
    %1499 = vmatpush.bf16.msra.mxu0 0
    %1500 = vmatpush.bf16.msra.mxu0 0
    %1501 = vmatpush.bf16.msra.mxu0 0
    %1502 = vmatpush.bf16.msra.mxu0 0
    %1503 = vmatpush.bf16.msra.mxu0 %v1494
    %1504 = vmatmul.bf16.gmra.mxu0 %v1491
    %v1505 = vpop.f32.mrf.mxu0
    %v1506 = vadd.f32 0.0, %v1505
    %v1507 = vpop.f32.mrf.mxu0
    %1508 = vdwg.mxu0
    %1509 = vrot.lane.b32.xlu0 %v1159, 80
    %v1510 = vpop.permute.xlu0 %1509
    %1511 = vrot.lane.b32.xlu0 %v1159, 16
    %v1512 = vpop.permute.xlu0 %1511
    %v1514 = vsel %vm236, %v1510, 0
    %v1517 = vsel %vm236, %v1512, 0
    %1519 = vmatpush.bf16.xpose.msra.mxu0 0
    %1520 = vmatpush.bf16.xpose.msra.mxu0 0
    %1521 = vmatpush.bf16.xpose.msra.mxu0 0
    %1522 = vmatpush.bf16.xpose.msra.mxu0 0
    %1523 = vmatpush.bf16.xpose.msra.mxu0 0
    %1524 = vmatpush.bf16.xpose.msra.mxu0 0
    %1525 = vmatpush.bf16.xpose.msra.mxu0 0
    %1526 = vmatpush.bf16.xpose.msra.mxu0 %v1517
    %1527 = vmatmul.bf16.gmra.mxu0 %v1514
    %v1528 = vpop.f32.mrf.mxu0
    %v1529 = vadd.f32 0.0, %v1528
    %v1530 = vpop.f32.mrf.mxu0
    %1531 = vdwg.mxu0
    %1532 = vrot.lane.b32.xlu0 %v1183, 80
    %v1533 = vpop.permute.xlu0 %1532
    %1534 = vrot.lane.b32.xlu0 %v1183, 16
    %v1535 = vpop.permute.xlu0 %1534
    %v1537 = vsel %vm236, %v1533, 0
    %v1540 = vsel %vm236, %v1535, 0
    %1542 = vmatpush.bf16.xpose.msra.mxu0 0
    %1543 = vmatpush.bf16.xpose.msra.mxu0 0
    %1544 = vmatpush.bf16.xpose.msra.mxu0 0
    %1545 = vmatpush.bf16.xpose.msra.mxu0 0
    %1546 = vmatpush.bf16.xpose.msra.mxu0 0
    %1547 = vmatpush.bf16.xpose.msra.mxu0 0
    %1548 = vmatpush.bf16.xpose.msra.mxu0 0
    %1549 = vmatpush.bf16.xpose.msra.mxu0 %v1540
    %1550 = vmatmul.bf16.gmra.mxu0 %v1537
    %v1551 = vpop.f32.mrf.mxu0
    %v1552 = vadd.f32 0.0, %v1551
    %v1553 = vpop.f32.mrf.mxu0
    %1554 = vdwg.mxu0
    %v1555 = vmul.f32 %v1529, 0.25
    %v1556 = vmul.f32 %v1552, 0.25
    %v1557 = vadd.f32 %v1555, %v284
    %v1558 = vadd.f32 %v1556, %v285
    %v1559 = vsel %vm290, %v1557, -inf
    %1560 = vmax.xlane.f32.xlu0 %v1559
    %v1561 = vpop.xlane.xlu0 %1560
    %v1562 = vsel %vm290, %v1558, -inf
    %1563 = vmax.xlane.f32.xlu0 %v1562
    %v1564 = vpop.xlane.xlu0 %1563
    %v1565 = vsub.f32 %v1557, %v1561
    %v1566 = vsub.f32 %v1558, %v1564
    %v1567 = vmul.f32 %v1565, 1.442695
    %v1568 = vpow.pop %v1567
    %v1569 = vmul.f32 %v1566, 1.442695
    %v1570 = vpow.pop %v1569
    %v1571 = vsel %vm290, %v1568, 0.0
    %1572 = vadd.xlane.f32.xlu0 %v1571
    %v1573 = vpop.xlane.xlu0 %1572
    %v1574 = vsel %vm290, %v1570, 0.0
    %1575 = vadd.xlane.f32.xlu0 %v1574
    %v1576 = vpop.xlane.xlu0 %1575
    %v1577 = vrcp.pop %v1573
    %v1578 = vrcp.pop %v1576
    %v1579 = vmul.f32 %v1568, %v1577
    %v1580 = vmul.f32 %v1570, %v1578
    %v1581 = vpack.c.bf16 %v1579, %v1579
    %v1582 = vpack.c.bf16 %v1580, %v1580
    %1583 = vrot.lane.b32.xlu0 %v1347, 80
    %v1584 = vpop.permute.xlu0 %1583
    %v1586 = vsel %vm290, %v1581, 0
    %v1589 = vsel %vm318, %v1584, 0
    %1591 = vmatpush.bf16.msra.mxu0 0
    %1592 = vmatpush.bf16.msra.mxu0 0
    %1593 = vmatpush.bf16.msra.mxu0 0
    %1594 = vmatpush.bf16.msra.mxu0 0
    %1595 = vmatpush.bf16.msra.mxu0 0
    %1596 = vmatpush.bf16.msra.mxu0 0
    %1597 = vmatpush.bf16.msra.mxu0 0
    %1598 = vmatpush.bf16.msra.mxu0 %v1589
    %1599 = vmatmul.bf16.gmra.mxu0 %v1586
    %v1600 = vpop.f32.mrf.mxu0
    %v1601 = vadd.f32 0.0, %v1600
    %v1602 = vpop.f32.mrf.mxu0
    %1603 = vdwg.mxu0
    %1604 = vrot.lane.b32.xlu0 %v1371, 80
    %v1605 = vpop.permute.xlu0 %1604
    %v1607 = vsel %vm290, %v1582, 0
    %v1610 = vsel %vm318, %v1605, 0
    %1612 = vmatpush.bf16.msra.mxu0 0
    %1613 = vmatpush.bf16.msra.mxu0 0
    %1614 = vmatpush.bf16.msra.mxu0 0
    %1615 = vmatpush.bf16.msra.mxu0 0
    %1616 = vmatpush.bf16.msra.mxu0 0
    %1617 = vmatpush.bf16.msra.mxu0 0
    %1618 = vmatpush.bf16.msra.mxu0 0
    %1619 = vmatpush.bf16.msra.mxu0 %v1610
    %1620 = vmatmul.bf16.gmra.mxu0 %v1607
    %v1621 = vpop.f32.mrf.mxu0
    %v1622 = vadd.f32 0.0, %v1621
    %v1623 = vpop.f32.mrf.mxu0
    %1624 = vdwg.mxu0
    %1627 = vrot.lane.b32.xlu0 %v1366, 16
    %v1628 = vpop.permute.xlu0 %1627
    %1629 = vrot.lane.b32.xlu0 %v1390, 16
    %v1630 = vpop.permute.xlu0 %1629
    %1635 = vrot.lane.b32.xlu0 %v1485, 32
    %v1636 = vpop.permute.xlu0 %1635
    %1637 = vrot.lane.b32.xlu0 %v1506, 32
    %v1638 = vpop.permute.xlu0 %1637
    %1643 = vrot.lane.b32.xlu0 %v1601, 48
    %v1644 = vpop.permute.xlu0 %1643
    %1645 = vrot.lane.b32.xlu0 %v1622, 48
    %v1646 = vpop.permute.xlu0 %1645
    %v1649 = vsel %vm236, %v1249, %v1628
    %v1650 = vsel %vm236, %v1268, %v1630
    %v1651 = vsel %vm734, %v1649, %v1636
    %v1652 = vsel %vm734, %v1650, %v1638
    %v1653 = vsel %vm737, %v1651, %v1644
    %v1654 = vsel %vm737, %v1652, %v1646
    %v1655 = vpack.c.bf16 %v1654, %v1653
    %s1656 = scalar_lea.vmem %s6, 32
    %v1657 = vld [vmem:[%s1656] sm:$0xf]
    %v1658 = vld [vmem:[%s1656 + $0x4] sm:$0xf]
    %v1659 = vld [vmem:[%s1656 + $0x8] sm:$0xf]
    %v1660 = vld [vmem:[%s1656 + $0xc] sm:$0xf]
    %v1661 = vld [vmem:[%s1656 + $0x10] sm:$0xf]
    %v1662 = vld [vmem:[%s1656 + $0x14] sm:$0xf]
    %v1663 = vld [vmem:[%s1656 + $0x18] sm:$0xf]
    %v1664 = vld [vmem:[%s1656 + $0x1c] sm:$0xf]
    %s1665 = scalar_lea.vmem %s7, 1
    %v1666 = vld [vmem:[%s1665] sm:$0x1]
    %v1668 = vperm.slane %v1666, 0
    %v1678 = vunpack.c.l.b16 %v1657
    %v1679 = vunpack.c.l.b16 %v1658
    %v1680 = vunpack.c.l.b16 %v1659
    %v1681 = vunpack.c.l.b16 %v1660
    %v1682 = vunpack.c.l.b16 %v1661
    %v1683 = vunpack.c.l.b16 %v1662
    %v1684 = vunpack.c.l.b16 %v1663
    %v1685 = vunpack.c.l.b16 %v1664
    %v1686 = vpack.c.b16 %v1679, %v1678
    %v1687 = vpack.c.b16 %v1681, %v1680
    %v1688 = vpack.c.b16 %v1683, %v1682
    %v1689 = vpack.c.b16 %v1685, %v1684
    %v1695 = vsel %vm77, %v1655, 0
    %1697 = vmatpush.bf16.msra.mxu0 0
    %1698 = vmatpush.bf16.msra.mxu0 0
    %1699 = vmatpush.bf16.msra.mxu0 0
    %1700 = vmatpush.bf16.msra.mxu0 0
    %1701 = vmatpush.bf16.msra.mxu0 %v1689
    %1702 = vmatpush.bf16.msra.mxu0 %v1688
    %1703 = vmatpush.bf16.msra.mxu0 %v1687
    %1704 = vmatpush.bf16.msra.mxu0 %v1686
    %1705 = vmatmul.bf16.gmra.mxu0 %v1695
    %v1706 = vpop.f32.mrf.mxu0
    %v1707 = vadd.f32 %v1668, %v1706
    %v1708 = vpop.f32.mrf.mxu0
    %v1709 = vadd.f32 %v1668, %v1708
    %1710 = vdwg.mxu0
    %v1711 = vadd.f32 %v1063, %v1707
    %v1712 = vadd.f32 %v1064, %v1709
    %s1713 = scalar_lea.vmem %s8, 1
    %v1714 = vld [vmem:[%s1713] sm:$0x1]
    %s1715 = scalar_lea.vmem %s9, 1
    %v1716 = vld [vmem:[%s1715] sm:$0x1]
    %v1717 = vsel %vm77, %v1711, 0.0
    %1718 = vadd.xlane.f32.xlu0 %v1717
    %v1719 = vpop.xlane.xlu0 %1718
    %v1720 = vsel %vm77, %v1712, 0.0
    %1721 = vadd.xlane.f32.xlu0 %v1720
    %v1722 = vpop.xlane.xlu0 %1721
    %v1723 = vmul.f32 %v1719, %v90
    %v1724 = vmul.f32 %v1722, %v90
    %v1725 = vsub.f32 %v1711, %v1723
    %v1726 = vsub.f32 %v1712, %v1724
    %v1727 = vmul.f32 %v1725, %v1725
    %v1728 = vmul.f32 %v1726, %v1726
    %v1729 = vsel %vm77, %v1727, 0.0
    %1730 = vadd.xlane.f32.xlu0 %v1729
    %v1731 = vpop.xlane.xlu0 %1730
    %v1732 = vsel %vm77, %v1728, 0.0
    %1733 = vadd.xlane.f32.xlu0 %v1732
    %v1734 = vpop.xlane.xlu0 %1733
    %v1735 = vmul.f32 %v1731, %v90
    %v1736 = vmul.f32 %v1734, %v90
    %v1737 = vadd.f32 %v1735, 1e-05
    %v1738 = vadd.f32 %v1736, 1e-05
    %v1739 = vrsqrt.pop %v1737
    %v1740 = vmul.f32 %v1739, %v1737
    %v1741 = vmul.f32 %v1740, %v1739
    %v1742 = vmul.f32 0.5, %v1741
    %v1743 = vsub.f32 1.5, %v1742
    %v1744 = vmul.f32 %v1739, %v1743
    %vm1745 = vweird.f32 %v1737
    %vm1746 = vweird.f32 %v1739
    %vm1747 = vmor %vm1745, %vm1746
    %v1748 = vsel %vm1747, %v1739, %v1744
    %v1749 = vrsqrt.pop %v1738
    %v1750 = vmul.f32 %v1749, %v1738
    %v1751 = vmul.f32 %v1750, %v1749
    %v1752 = vmul.f32 0.5, %v1751
    %v1753 = vsub.f32 1.5, %v1752
    %v1754 = vmul.f32 %v1749, %v1753
    %vm1755 = vweird.f32 %v1738
    %vm1756 = vweird.f32 %v1749
    %vm1757 = vmor %vm1755, %vm1756
    %v1758 = vsel %vm1757, %v1749, %v1754
    %v1759 = vmul.f32 %v1725, %v1748
    %v1760 = vmul.f32 %v1726, %v1758
    %v1762 = vperm.slane %v1714, 0
    %v1764 = vmul.f32 %v1759, %v1762
    %v1765 = vmul.f32 %v1760, %v1762
    %v1767 = vperm.slane %v1716, 0
    %v1769 = vadd.f32 %v1764, %v1767
    %v1770 = vadd.f32 %v1765, %v1767
    %v1771 = vpack.c.bf16 %v1770, %v1769
    %s1772 = scalar_lea.vmem %s10, 32
    %v1773 = vld [vmem:[%s1772] sm:$0xf]
    %v1774 = vld [vmem:[%s1772 + $0x4] sm:$0xf]
    %v1775 = vld [vmem:[%s1772 + $0x8] sm:$0xf]
    %v1776 = vld [vmem:[%s1772 + $0xc] sm:$0xf]
    %v1777 = vld [vmem:[%s1772 + $0x10] sm:$0xf]
    %v1778 = vld [vmem:[%s1772 + $0x14] sm:$0xf]
    %v1779 = vld [vmem:[%s1772 + $0x18] sm:$0xf]
    %v1780 = vld [vmem:[%s1772 + $0x1c] sm:$0xf]
    %s1781 = scalar_lea.vmem %s11, 1
    %v1782 = vld [vmem:[%s1781] sm:$0x1]
    %v1784 = vperm.slane %v1782, 0
    %v1794 = vunpack.c.l.b16 %v1773
    %v1795 = vunpack.c.l.b16 %v1774
    %v1796 = vunpack.c.l.b16 %v1775
    %v1797 = vunpack.c.l.b16 %v1776
    %v1798 = vunpack.c.l.b16 %v1777
    %v1799 = vunpack.c.l.b16 %v1778
    %v1800 = vunpack.c.l.b16 %v1779
    %v1801 = vunpack.c.l.b16 %v1780
    %v1802 = vpack.c.b16 %v1795, %v1794
    %v1803 = vpack.c.b16 %v1797, %v1796
    %v1804 = vpack.c.b16 %v1799, %v1798
    %v1805 = vpack.c.b16 %v1801, %v1800
    %v1811 = vsel %vm77, %v1771, 0
    %1813 = vmatpush.bf16.msra.mxu0 0
    %1814 = vmatpush.bf16.msra.mxu0 0
    %1815 = vmatpush.bf16.msra.mxu0 0
    %1816 = vmatpush.bf16.msra.mxu0 0
    %1817 = vmatpush.bf16.msra.mxu0 %v1805
    %1818 = vmatpush.bf16.msra.mxu0 %v1804
    %1819 = vmatpush.bf16.msra.mxu0 %v1803
    %1820 = vmatpush.bf16.msra.mxu0 %v1802
    %1821 = vmatmul.bf16.gmra.mxu0 %v1811
    %v1822 = vpop.f32.mrf.mxu0
    %v1823 = vadd.f32 %v1784, %v1822
    %v1824 = vpop.f32.mrf.mxu0
    %v1825 = vadd.f32 %v1784, %v1824
    %1826 = vdwg.mxu0
    %v1827 = vmul.f32 %v1823, %v1823
    %v1828 = vmul.f32 %v1825, %v1825
    %v1829 = vmul.f32 %v1823, %v1827
    %v1830 = vmul.f32 %v1825, %v1828
    %v1831 = vmul.f32 %v1829, 0.044715
    %v1832 = vmul.f32 %v1830, 0.044715
    %v1833 = vadd.f32 %v1823, %v1831
    %v1834 = vadd.f32 %v1825, %v1832
    %v1835 = vmul.f32 %v1833, 0.7978846
    %v1836 = vmul.f32 %v1834, 0.7978846
    %v1837 = vtanh.pop %v1835
    %v1838 = vtanh.pop %v1836
    %v1839 = vadd.f32 %v1837, 1.0
    %v1840 = vadd.f32 %v1838, 1.0
    %v1841 = vmul.f32 %v1839, 0.5
    %v1842 = vmul.f32 %v1840, 0.5
    %v1843 = vmul.f32 %v1823, %v1841
    %v1844 = vmul.f32 %v1825, %v1842
    %v1845 = vpack.c.bf16 %v1844, %v1843
    %s1846 = scalar_lea.vmem %s12, 64
    %v1847 = vld [vmem:[%s1846] sm:$0xf]
    %v1848 = vld [vmem:[%s1846 + $0x4] sm:$0xf]
    %v1849 = vld [vmem:[%s1846 + $0x8] sm:$0xf]
    %v1850 = vld [vmem:[%s1846 + $0xc] sm:$0xf]
    %v1851 = vld [vmem:[%s1846 + $0x10] sm:$0xf]
    %v1852 = vld [vmem:[%s1846 + $0x14] sm:$0xf]
    %v1853 = vld [vmem:[%s1846 + $0x18] sm:$0xf]
    %v1854 = vld [vmem:[%s1846 + $0x1c] sm:$0xf]
    %v1855 = vld [vmem:[%s1846 + $0x20] sm:$0xf]
    %v1856 = vld [vmem:[%s1846 + $0x24] sm:$0xf]
    %v1857 = vld [vmem:[%s1846 + $0x28] sm:$0xf]
    %v1858 = vld [vmem:[%s1846 + $0x2c] sm:$0xf]
    %v1859 = vld [vmem:[%s1846 + $0x30] sm:$0xf]
    %v1860 = vld [vmem:[%s1846 + $0x34] sm:$0xf]
    %v1861 = vld [vmem:[%s1846 + $0x38] sm:$0xf]
    %v1862 = vld [vmem:[%s1846 + $0x3c] sm:$0xf]
    %s1863 = scalar_lea.vmem %s13, 1
    %v1864 = vld [vmem:[%s1863] sm:$0x1]
    %v1866 = vperm.slane %v1864, 0
    %v1884 = vunpack.c.l.b16 %v1847
    %v1885 = vunpack.c.l.b16 %v1848
    %v1886 = vunpack.c.l.b16 %v1849
    %v1887 = vunpack.c.l.b16 %v1850
    %v1888 = vunpack.c.l.b16 %v1851
    %v1889 = vunpack.c.l.b16 %v1852
    %v1890 = vunpack.c.l.b16 %v1853
    %v1891 = vunpack.c.l.b16 %v1854
    %v1892 = vunpack.c.l.b16 %v1855
    %v1893 = vunpack.c.l.b16 %v1856
    %v1894 = vunpack.c.l.b16 %v1857
    %v1895 = vunpack.c.l.b16 %v1858
    %v1896 = vunpack.c.l.b16 %v1859
    %v1897 = vunpack.c.l.b16 %v1860
    %v1898 = vunpack.c.l.b16 %v1861
    %v1899 = vunpack.c.l.b16 %v1862
    %v1900 = vpack.c.b16 %v1885, %v1884
    %v1901 = vpack.c.b16 %v1887, %v1886
    %v1902 = vpack.c.b16 %v1889, %v1888
    %v1903 = vpack.c.b16 %v1891, %v1890
    %v1904 = vpack.c.b16 %v1893, %v1892
    %v1905 = vpack.c.b16 %v1895, %v1894
    %v1906 = vpack.c.b16 %v1897, %v1896
    %v1907 = vpack.c.b16 %v1899, %v1898
    %1916 = vmatpush.bf16.msra.mxu0 %v1907
    %1917 = vmatpush.bf16.msra.mxu0 %v1906
    %1918 = vmatpush.bf16.msra.mxu0 %v1905
    %1919 = vmatpush.bf16.msra.mxu0 %v1904
    %1920 = vmatpush.bf16.msra.mxu0 %v1903
    %1921 = vmatpush.bf16.msra.mxu0 %v1902
    %1922 = vmatpush.bf16.msra.mxu0 %v1901
    %1923 = vmatpush.bf16.msra.mxu0 %v1900
    %1924 = vmatmul.bf16.gmra.mxu0 %v1845
    %v1925 = vpop.f32.mrf.mxu0
    %v1926 = vadd.f32 %v1866, %v1925
    %v1927 = vpop.f32.mrf.mxu0
    %v1928 = vadd.f32 %v1866, %v1927
    %1929 = vdwg.mxu0
    %v1930 = vadd.f32 %v1769, %v1926
    %v1931 = vadd.f32 %v1770, %v1928
    %s1932 = scalar_lea.vmem %s14, 1
    %v1933 = vld [vmem:[%s1932] sm:$0x1]
    %s1934 = scalar_lea.vmem %s15, 1
    %v1935 = vld [vmem:[%s1934] sm:$0x1]
    %v1936 = vsel %vm77, %v1930, 0.0
    %1937 = vadd.xlane.f32.xlu0 %v1936
    %v1938 = vpop.xlane.xlu0 %1937
    %v1939 = vsel %vm77, %v1931, 0.0
    %1940 = vadd.xlane.f32.xlu0 %v1939
    %v1941 = vpop.xlane.xlu0 %1940
    %v1942 = vmul.f32 %v1938, %v90
    %v1943 = vmul.f32 %v1941, %v90
    %v1944 = vsub.f32 %v1930, %v1942
    %v1945 = vsub.f32 %v1931, %v1943
    %v1946 = vmul.f32 %v1944, %v1944
    %v1947 = vmul.f32 %v1945, %v1945
    %v1948 = vsel %vm77, %v1946, 0.0
    %1949 = vadd.xlane.f32.xlu0 %v1948
    %v1950 = vpop.xlane.xlu0 %1949
    %v1951 = vsel %vm77, %v1947, 0.0
    %1952 = vadd.xlane.f32.xlu0 %v1951
    %v1953 = vpop.xlane.xlu0 %1952
    %v1954 = vmul.f32 %v1950, %v90
    %v1955 = vmul.f32 %v1953, %v90
    %v1956 = vadd.f32 %v1954, 1e-05
    %v1957 = vadd.f32 %v1955, 1e-05
    %v1958 = vrsqrt.pop %v1956
    %v1959 = vmul.f32 %v1958, %v1956
    %v1960 = vmul.f32 %v1959, %v1958
    %v1961 = vmul.f32 0.5, %v1960
    %v1962 = vsub.f32 1.5, %v1961
    %v1963 = vmul.f32 %v1958, %v1962
    %vm1964 = vweird.f32 %v1956
    %vm1965 = vweird.f32 %v1958
    %vm1966 = vmor %vm1964, %vm1965
    %v1967 = vsel %vm1966, %v1958, %v1963
    %v1968 = vrsqrt.pop %v1957
    %v1969 = vmul.f32 %v1968, %v1957
    %v1970 = vmul.f32 %v1969, %v1968
    %v1971 = vmul.f32 0.5, %v1970
    %v1972 = vsub.f32 1.5, %v1971
    %v1973 = vmul.f32 %v1968, %v1972
    %vm1974 = vweird.f32 %v1957
    %vm1975 = vweird.f32 %v1968
    %vm1976 = vmor %vm1974, %vm1975
    %v1977 = vsel %vm1976, %v1968, %v1973
    %v1978 = vmul.f32 %v1944, %v1967
    %v1979 = vmul.f32 %v1945, %v1977
    %v1981 = vperm.slane %v1933, 0
    %v1983 = vmul.f32 %v1978, %v1981
    %v1984 = vmul.f32 %v1979, %v1981
    %v1986 = vperm.slane %v1935, 0
    %v1988 = vadd.f32 %v1983, %v1986
    %v1989 = vadd.f32 %v1984, %v1986
    %v1990 = vpack.c.bf16 %v1988, %v1988
    %v1991 = vpack.c.bf16 %v1989, %v1989
    %v1992 = vld [vmem:[%s16] sm:$0xf]
    %v1993 = vld [vmem:[%s16 + $0x4] sm:$0xf]
    %v1994 = vld [vmem:[%s16 + $0x8] sm:$0xf]
    %v1995 = vld [vmem:[%s16 + $0xc] sm:$0xf]
    %v1996 = vld [vmem:[%s16 + $0x10] sm:$0xf]
    %v1997 = vld [vmem:[%s16 + $0x14] sm:$0xf]
    %v1998 = vld [vmem:[%s16 + $0x18] sm:$0xf]
    %v1999 = vld [vmem:[%s16 + $0x1c] sm:$0xf]
    %v2000 = vld [vmem:[%s17] sm:$0x1]
    %v2002 = vperm.slane %v2000, 0
    %v2006 = vunpack.c.l.b16 %v1990
    %v2007 = vunpack.c.l.b16 %v1991
    %v2008 = vrot.slane %v2007, 7
    %vm2009 = vcmask 1041409
    %v2010 = vsel %vm2009, %v2008, %v2006
    %v2011 = vpack.c.b16 %v2010, %v2010
    %v2020 = vunpack.c.l.b16 %v1992
    %v2021 = vunpack.c.l.b16 %v1993
    %v2022 = vunpack.c.l.b16 %v1994
    %v2023 = vunpack.c.l.b16 %v1995
    %v2024 = vunpack.c.l.b16 %v1996
    %v2025 = vunpack.c.l.b16 %v1997
    %v2026 = vunpack.c.l.b16 %v1998
    %v2027 = vunpack.c.l.b16 %v1999
    %v2028 = vpack.c.b16 %v2021, %v2020
    %v2029 = vpack.c.b16 %v2023, %v2022
    %v2030 = vpack.c.b16 %v2025, %v2024
    %v2031 = vpack.c.b16 %v2027, %v2026
    %v2037 = vsel %vm77, %v2011, 0
    %2039 = vmatpush.bf16.msra.mxu0 0
    %2040 = vmatpush.bf16.msra.mxu0 0
    %2041 = vmatpush.bf16.msra.mxu0 0
    %2042 = vmatpush.bf16.msra.mxu0 0
    %2043 = vmatpush.bf16.msra.mxu0 %v2031
    %2044 = vmatpush.bf16.msra.mxu0 %v2030
    %2045 = vmatpush.bf16.msra.mxu0 %v2029
    %2046 = vmatpush.bf16.msra.mxu0 %v2028
    %2047 = vmatmul.bf16.gmra.mxu0 %v2037
    %v2048 = vpop.f32.mrf.mxu0
    %v2049 = vadd.f32 %v2002, %v2048
    %v2050 = vpop.f32.mrf.mxu0
    %2051 = vdwg.mxu0
    %v2052 = vtanh.pop %v2049
    %v2053 = vpack.c.bf16 %v2052, %v2052
    %v2054 = vld [vmem:[%s18] sm:$0xf]
    %v2055 = vld [vmem:[%s18 + $0x4] sm:$0xf]
    %v2056 = vld [vmem:[%s18 + $0x8] sm:$0xf]
    %v2057 = vld [vmem:[%s18 + $0xc] sm:$0xf]
    %v2058 = vld [vmem:[%s18 + $0x10] sm:$0xf]
    %v2059 = vld [vmem:[%s18 + $0x14] sm:$0xf]
    %v2060 = vld [vmem:[%s18 + $0x18] sm:$0xf]
    %v2061 = vld [vmem:[%s18 + $0x1c] sm:$0xf]
    %v2062 = vld [vmem:[%s19] sm:$0x1]
    %v2064 = vperm.slane %v2062, 0
    %v2074 = vunpack.c.l.b16 %v2054
    %v2075 = vunpack.c.l.b16 %v2055
    %v2076 = vunpack.c.l.b16 %v2056
    %v2077 = vunpack.c.l.b16 %v2057
    %v2078 = vunpack.c.l.b16 %v2058
    %v2079 = vunpack.c.l.b16 %v2059
    %v2080 = vunpack.c.l.b16 %v2060
    %v2081 = vunpack.c.l.b16 %v2061
    %v2082 = vpack.c.b16 %v2075, %v2074
    %v2083 = vpack.c.b16 %v2077, %v2076
    %v2084 = vpack.c.b16 %v2079, %v2078
    %v2085 = vpack.c.b16 %v2081, %v2080
    %v2091 = vsel %vm77, %v2053, 0
    %2093 = vmatpush.bf16.msra.mxu0 0
    %2094 = vmatpush.bf16.msra.mxu0 0
    %2095 = vmatpush.bf16.msra.mxu0 0
    %2096 = vmatpush.bf16.msra.mxu0 0
    %2097 = vmatpush.bf16.msra.mxu0 %v2085
    %2098 = vmatpush.bf16.msra.mxu0 %v2084
    %2099 = vmatpush.bf16.msra.mxu0 %v2083
    %2100 = vmatpush.bf16.msra.mxu0 %v2082
    %2101 = vmatmul.bf16.gmra.mxu0 %v2091
    %v2102 = vpop.f32.mrf.mxu0
    %v2103 = vadd.f32 %v2064, %v2102
    %v2104 = vpop.f32.mrf.mxu0
    %2105 = vdwg.mxu0
    %v2106 = vtanh.pop %v2103
    %v2107 = vpack.c.bf16 %v2106, %v2106
    %v2108 = vld [vmem:[%s20] sm:$0xf]
    %v2109 = vld [vmem:[%s20 + $0x4] sm:$0xf]
    %v2110 = vld [vmem:[%s20 + $0x8] sm:$0xf]
    %v2111 = vld [vmem:[%s20 + $0xc] sm:$0xf]
    %v2112 = vld [vmem:[%s20 + $0x10] sm:$0xf]
    %v2113 = vld [vmem:[%s20 + $0x14] sm:$0xf]
    %v2114 = vld [vmem:[%s20 + $0x18] sm:$0xf]
    %v2115 = vld [vmem:[%s20 + $0x1c] sm:$0xf]
    %v2116 = vld [vmem:[%s21] sm:$0x1]
    %v2118 = vperm.slane %v2116, 0
    %v2128 = vunpack.c.l.b16 %v2108
    %v2129 = vunpack.c.l.b16 %v2109
    %v2130 = vunpack.c.l.b16 %v2110
    %v2131 = vunpack.c.l.b16 %v2111
    %v2132 = vunpack.c.l.b16 %v2112
    %v2133 = vunpack.c.l.b16 %v2113
    %v2134 = vunpack.c.l.b16 %v2114
    %v2135 = vunpack.c.l.b16 %v2115
    %v2136 = vpack.c.b16 %v2129, %v2128
    %v2137 = vpack.c.b16 %v2131, %v2130
    %v2138 = vpack.c.b16 %v2133, %v2132
    %v2139 = vpack.c.b16 %v2135, %v2134
    %v2145 = vsel %vm77, %v2107, 0
    %2147 = vmatpush.bf16.msra.mxu0 0
    %2148 = vmatpush.bf16.msra.mxu0 0
    %2149 = vmatpush.bf16.msra.mxu0 0
    %2150 = vmatpush.bf16.msra.mxu0 0
    %2151 = vmatpush.bf16.msra.mxu0 %v2139
    %2152 = vmatpush.bf16.msra.mxu0 %v2138
    %2153 = vmatpush.bf16.msra.mxu0 %v2137
    %2154 = vmatpush.bf16.msra.mxu0 %v2136
    %2155 = vmatmul.bf16.gmra.mxu0 %v2145
    %v2156 = vpop.f32.mrf.mxu0
    %v2157 = vadd.f32 %v2118, %v2156
    %v2158 = vpop.f32.mrf.mxu0
    %2159 = vdwg.mxu0
    %2160 = vst [vmem:[#allocation2] sm:$0x3] %v2157
    // Predicated region
    $region90: #{forward.1} parent=1 // pred_check
      _
    $region91: #{forward.1} parent=1 // pred_check_branch
      %2162 = sbr.rel (0) target = $region93
    $region92: #{forward.1} parent=1 // pred_region
      %2164 = vsyncadd [#allocation3], 0
      %s2166 = sshll.u32 [#allocation2], 4
      %s2167 = int_to_ptr.vmem [resolvable:$true] %s2166
      %s2168 = sshll.u32 %s22, 4
      %s2169 = int_to_ptr.hbm [resolvable:$true] %s2168
      %2171 = dma.vmem_to_hbm [thread:$0]  %s2167, 32, %s2169, [#allocation3]
    $region93: #{forward.1} parent=1 // pred_fallthru
      _
    // Predicated region
    $region94: #{forward.1} parent=1 // pred_check
      _
    $region95: #{forward.1} parent=1 // pred_check_branch
      %2173 = sbr.rel (0) target = $region97
    $region96: #{forward.1} parent=1 // pred_region
      %2175 = dma.done [#allocation3], 32
    $region97: #{forward.1} parent=1 // pred_fallthru
      _
    %2176 = vsyncpa [#allocation3], 1

</llo_original>
